<compile_context>
chip_gen: v5e
topology: v5e:2x2
jax: 0.10.0
libtpu: 0.0.40
codegen_flags: <defaults>
</compile_context>

<pallas_src>
import math

import jax
import jax.numpy as jnp
from jax.experimental import pallas as pl
from jax.experimental.pallas import tpu as pltpu

# ---------------- small ESM2-style config ----------------
VOCAB = 33
HIDDEN = 32
NUM_HEADS = 4
HEAD_DIM = HIDDEN // NUM_HEADS
HALF_DIM = HEAD_DIM // 2
INTERMEDIATE = 64
NUM_LAYERS = 2
LN_EPS = 1e-5
PAD_TOKEN_ID = 1
MASK_TOKEN_ID = 32
MASK_RATIO_TRAIN = 0.15 * 0.8  # ESM token-dropout constant


# ---------------- in-kernel helpers (traced) ----------------
def _layer_norm(x, w, b):
    mu = jnp.mean(x, axis=-1, keepdims=True)
    var = jnp.mean(jnp.square(x - mu), axis=-1, keepdims=True)
    return (x - mu) * jax.lax.rsqrt(var + LN_EPS) * w + b


def _gelu(x):  # exact (erf) gelu, as in modeling_esm
    return 0.5 * x * (1.0 + jax.lax.erf(x / math.sqrt(2.0)))


def _roll_lanes(t, shift):
    # Static circular roll along the lane (last) axis; identical to
    # jnp.roll(t, shift, axis=-1) and lowers to a single lane-slice concat.
    # TODO(synk): once H is a 128-lane multiple use pltpu.roll (XLU) instead.
    n = t.shape[-1]
    i = (-shift) % n
    return jnp.concatenate([t[:, i:], t[:, :i]], axis=-1)


# ---------------- fused encoder kernel (one batch item x one layer per step) ---
def encoder_kernel(x_ref, bias_ref, rot_ref, ln_ref, wqkv_ref, bqkv_ref,
                   wo_ref, bo_ref, w1_ref, b1_ref, w2_ref, b2_ref,
                   fln_ref, out_ref, ctx_ref):
    """grid = (B, NUM_LAYERS).  One step = one encoder layer of one batch item.

    x_ref:    (S, H)      embeddings for this batch item (read only at l == 0)
    bias_ref: (1, 1, S)   additive key mask (-1e9 at padded keys)
    rot_ref:  (3, S, H)   packed rotary: [cos, -sin@first-half, +sin@second-half]
    ln_ref:   (1, 4, H)   this layer's [ln1_w, ln1_b, ln2_w, ln2_b]   (f32)
    wqkv_ref: (1, H, 3H)  fused Q|K|V projection (bf16, q-scale folded in)
    bqkv_ref: (1, 1, 3H)  (f32, q-scale folded in)
    wo/w1/w2: bf16 weight blocks;  bo/b1/b2: f32 bias blocks
    fln_ref:  (2, 1, H)   final LayerNorm [w, b]
    out_ref:  (S, H)      residual stream, resident across the layer axis
    ctx_ref:  (S, H)      VMEM scratch: per-head attention contexts
    """
    layer = pl.program_id(1)
    n_layers = pl.num_programs(1)

    @pl.when(layer == 0)
    def _():
        out_ref[...] = x_ref[...]

    x = out_ref[...]                      # (S, H) f32 residual stream
    cos = rot_ref[0]
    sin_lo = rot_ref[1]                   # -sin, nonzero on first half of each head slot
    sin_hi = rot_ref[2]                   # +sin, nonzero on second half of each head slot

    def rope(t):
        # all heads at once: t*cos + rotate_half(t)*sin, rotate_half expressed as
        # two static lane rolls masked/signed via the precomputed sin tables.
        return (t * cos
                + _roll_lanes(t, -HALF_DIM) * sin_lo
                + _roll_lanes(t, HALF_DIM) * sin_hi)

    lnp = ln_ref[0]                       # (4, H)
    key_bias = bias_ref[0]                # (1, S)

    # ----- self-attention block (pre-LN, rotary, residual) -----
    h = _layer_norm(x, lnp[0:1], lnp[1:2])
    qkv = jnp.dot(h.astype(jnp.bfloat16), wqkv_ref[0],
                  preferred_element_type=jnp.float32) + bqkv_ref[0]
    q = rope(qkv[:, 0:HIDDEN])            # 1/sqrt(head_dim) already folded into wqkv/bqkv
    k = rope(qkv[:, HIDDEN:2 * HIDDEN])
    v = qkv[:, 2 * HIDDEN:3 * HIDDEN].astype(jnp.bfloat16)

    # TODO(synk): at real ESM2 sizes batch the heads into one dot_general with a
    # head batch dim instead of this static per-head loop.
    for hh in range(NUM_HEADS):
        sl = slice(hh * HEAD_DIM, (hh + 1) * HEAD_DIM)
        s = jax.lax.dot_general(q[:, sl].astype(jnp.bfloat16),
                                k[:, sl].astype(jnp.bfloat16),
                                (((1,), (1,)), ((), ())),
                                preferred_element_type=jnp.float32)
        s = s + key_bias                  # mask out padded keys (f32)
        s = s - jnp.max(s, axis=-1, keepdims=True)
        p = jnp.exp(s)
        p = p * pl.reciprocal(jnp.sum(p, axis=-1, keepdims=True), approx=True)
        ctx_ref[:, sl] = jnp.dot(p.astype(jnp.bfloat16), v[:, sl],
                                 preferred_element_type=jnp.float32)

    x = x + jnp.dot(ctx_ref[...].astype(jnp.bfloat16), wo_ref[0],
                    preferred_element_type=jnp.float32) + bo_ref[0]

    # ----- feed-forward block (pre-LN, exact GELU, residual) -----
    h2 = _layer_norm(x, lnp[2:3], lnp[3:4])
    inter = _gelu(jnp.dot(h2.astype(jnp.bfloat16), w1_ref[0],
                          preferred_element_type=jnp.float32) + b1_ref[0])
    x = x + jnp.dot(inter.astype(jnp.bfloat16), w2_ref[0],
                    preferred_element_type=jnp.float32) + b2_ref[0]

    @pl.when(layer < n_layers - 1)
    def _():
        out_ref[...] = x

    @pl.when(layer == n_layers - 1)
    def _():
        out_ref[...] = _layer_norm(x, fln_ref[0], fln_ref[1])


# ---------------- plain-JAX glue ----------------
def _rotary_pack(seq_len):
    """(3, seq_len, HIDDEN) packed [cos, -sin@first-half, +sin@second-half]."""
    inv_freq = 1.0 / (10000.0 ** (jnp.arange(0, HEAD_DIM, 2, dtype=jnp.float32) / HEAD_DIM))
    t = jnp.arange(seq_len, dtype=jnp.float32)
    freqs = jnp.outer(t, inv_freq)
    emb = jnp.concatenate([freqs, freqs], axis=-1)        # (S, HEAD_DIM)
    cos = jnp.tile(jnp.cos(emb), (1, NUM_HEADS))          # (S, H)
    sin = jnp.tile(jnp.sin(emb), (1, NUM_HEADS))
    lane = jnp.arange(HIDDEN) % HEAD_DIM
    first_half = (lane < HALF_DIM)[None, :]
    sin_lo = jnp.where(first_half, -sin, 0.0)             # pairs with roll(t, -HALF)
    sin_hi = jnp.where(first_half, 0.0, sin)              # pairs with roll(t, +HALF)
    return jnp.stack([cos, sin_lo, sin_hi], axis=0)       # (3, S, H)


def _stack_layer_params(params):
    """Stack per-layer weights along a leading layer axis.

    Matmul weights are cast to bf16 (MXU-native, halves weight DMA); biases and
    LayerNorm params stay f32.  The 1/sqrt(head_dim) query scale is folded into
    the Q columns of wqkv/bqkv so the kernel never multiplies by it.
    """
    layers = params["layers"]
    q_scale = 1.0 / math.sqrt(HEAD_DIM)
    ln = jnp.stack([jnp.concatenate([p["ln1_w"], p["ln1_b"], p["ln2_w"], p["ln2_b"]],
                                    axis=0) for p in layers])                        # (L,4,H)
    wqkv = jnp.stack([jnp.concatenate([p["wq"] * q_scale, p["wk"], p["wv"]], axis=1)
                      for p in layers]).astype(jnp.bfloat16)                         # (L,H,3H)
    bqkv = jnp.stack([jnp.concatenate([p["bq"] * q_scale, p["bk"], p["bv"]], axis=1)
                      for p in layers])                                              # (L,1,3H)
    wo = jnp.stack([p["wo"] for p in layers]).astype(jnp.bfloat16)                   # (L,H,H)
    bo = jnp.stack([p["bo"] for p in layers])                                        # (L,1,H)
    w1 = jnp.stack([p["w1"] for p in layers]).astype(jnp.bfloat16)                   # (L,H,I)
    b1 = jnp.stack([p["b1"] for p in layers])                                        # (L,1,I)
    w2 = jnp.stack([p["w2"] for p in layers]).astype(jnp.bfloat16)                   # (L,I,H)
    b2 = jnp.stack([p["b2"] for p in layers])                                        # (L,1,H)
    fln = jnp.stack([params["final_ln_w"], params["final_ln_b"]], axis=0)            # (2,1,H)
    return ln, wqkv, bqkv, wo, bo, w1, b1, w2, b2, fln


def esm_embed(input_ids, attention_mask, word_emb):
    emb = jnp.take(word_emb, input_ids, axis=0)           # (B, S, H)
    mask_f = attention_mask.astype(jnp.float32)
    is_mask_tok = input_ids == MASK_TOKEN_ID
    emb = jnp.where(is_mask_tok[..., None], 0.0, emb)     # ESM token-dropout zeroing
    src_len = jnp.maximum(jnp.sum(mask_f, axis=-1), 1.0)  # guard all-padding rows
    mask_ratio_obs = jnp.sum(is_mask_tok.astype(jnp.float32), axis=-1) / src_len
    scale = (1.0 - MASK_RATIO_TRAIN) / jnp.maximum(1.0 - mask_ratio_obs, 1e-6)
    emb = emb * scale[:, None, None]
    emb = emb * mask_f[..., None]
    return emb


def protein_1d_encoder_forward(input_ids, attention_mask, params, out_dtype=jnp.float32):
    """Mirrors Protein1dEncoder.forward on pre-tokenized ids:
    returns (last_hidden[:, :-1, :].astype(out_dtype), attention_mask[:, :-1].bool())."""
    B, S = input_ids.shape
    S_pad = max(8, -(-S // 8) * 8)                        # pad seq to sublane granule
    pad = S_pad - S
    ids_p = jnp.pad(input_ids, ((0, 0), (0, pad)), constant_values=PAD_TOKEN_ID)
    mask_p = jnp.pad(attention_mask, ((0, 0), (0, pad)), constant_values=0)

    x = esm_embed(ids_p, mask_p, params["word_emb"]).reshape(B * S_pad, HIDDEN)
    bias = ((mask_p.astype(jnp.float32) - 1.0) * 1e9).reshape(B, 1, S_pad)
    rot = _rotary_pack(S_pad)
    ln, wqkv, bqkv, wo, bo, w1, b1, w2, b2, fln = _stack_layer_params(params)

    layer_3d = lambda b, l: (l, 0, 0)     # per-layer weight blocks (streamed / double-buffered)
    const_3d = lambda b, l: (0, 0, 0)     # shared tables, fetched once

    y = pl.pallas_call(
        encoder_kernel,
        out_shape=jax.ShapeDtypeStruct((B * S_pad, HIDDEN), jnp.float32),
        grid_spec=pltpu.PrefetchScalarGridSpec(
            num_scalar_prefetch=0,
            grid=(B, NUM_LAYERS),
            in_specs=[
                pl.BlockSpec((S_pad, HIDDEN), lambda b, l: (b, 0)),        # x (embeddings)
                pl.BlockSpec((1, 1, S_pad), lambda b, l: (b, 0, 0)),       # key bias
                pl.BlockSpec((3, S_pad, HIDDEN), const_3d),                # rotary tables
                pl.BlockSpec((1, 4, HIDDEN), layer_3d),                    # ln params
                pl.BlockSpec((1, HIDDEN, 3 * HIDDEN), layer_3d),           # wqkv (bf16)
                pl.BlockSpec((1, 1, 3 * HIDDEN), layer_3d),                # bqkv
                pl.BlockSpec((1, HIDDEN, HIDDEN), layer_3d),               # wo (bf16)
                pl.BlockSpec((1, 1, HIDDEN), layer_3d),                    # bo
                pl.BlockSpec((1, HIDDEN, INTERMEDIATE), layer_3d),         # w1 (bf16)
                pl.BlockSpec((1, 1, INTERMEDIATE), layer_3d),              # b1
                pl.BlockSpec((1, INTERMEDIATE, HIDDEN), layer_3d),         # w2 (bf16)
                pl.BlockSpec((1, 1, HIDDEN), layer_3d),                    # b2
                pl.BlockSpec((2, 1, HIDDEN), const_3d),                    # final LN
            ],
            out_specs=pl.BlockSpec((S_pad, HIDDEN), lambda b, l: (b, 0)),
            scratch_shapes=[pltpu.VMEM((S_pad, HIDDEN), jnp.float32)],     # ctx buffer
        ),
        compiler_params=pltpu.CompilerParams(
            dimension_semantics=("parallel", "arbitrary"),
            vmem_limit_bytes=32 * 1024 * 1024,
        ),
    )(x, bias, rot, ln, wqkv, bqkv, wo, bo, w1, b1, w2, b2, fln)

    y = y.reshape(B, S_pad, HIDDEN)[:, :S, :]
    out = y[:, :-1, :].astype(out_dtype)
    out_mask = attention_mask[:, :-1].astype(bool)
    return out, out_mask


# ---------------- pure-JAX reference (ground truth for the check) ----------------
def reference_forward(input_ids, attention_mask, params, out_dtype=jnp.float32):
    x = esm_embed(input_ids, attention_mask, params["word_emb"])          # (B, S, H)
    bias = ((attention_mask.astype(jnp.float32) - 1.0) * 1e9)[:, None, :]
    inv_freq = 1.0 / (10000.0 ** (jnp.arange(0, HEAD_DIM, 2, dtype=jnp.float32) / HEAD_DIM))
    t = jnp.arange(input_ids.shape[1], dtype=jnp.float32)
    emb = jnp.concatenate([jnp.outer(t, inv_freq)] * 2, axis=-1)
    cos, sin = jnp.cos(emb), jnp.sin(emb)
    scale = 1.0 / math.sqrt(HEAD_DIM)

    def ln(v, w, b):
        mu = jnp.mean(v, -1, keepdims=True)
        var = jnp.mean(jnp.square(v - mu), -1, keepdims=True)
        return (v - mu) * jax.lax.rsqrt(var + LN_EPS) * w + b

    def rot_half(v):
        h = v.shape[-1] // 2
        return jnp.concatenate([-v[..., h:], v[..., :h]], axis=-1)

    for p in params["layers"]:
        h = ln(x, p["ln1_w"], p["ln1_b"])
        q = h @ p["wq"] + p["bq"]
        k = h @ p["wk"] + p["bk"]
        v = h @ p["wv"] + p["bv"]
        attn = jnp.zeros_like(x)
        for hh in range(NUM_HEADS):
            sl = slice(hh * HEAD_DIM, (hh + 1) * HEAD_DIM)
            qh = q[..., sl] * scale
            kh = k[..., sl]
            qh = qh * cos + rot_half(qh) * sin
            kh = kh * cos + rot_half(kh) * sin
            s = jnp.einsum("bqd,bkd->bqk", qh, kh) + bias
            pr = jax.nn.softmax(s, axis=-1)
            ctx = jnp.einsum("bqk,bkd->bqd", pr, v[..., sl])
            attn = attn + ctx @ p["wo"][sl, :]
        x = x + attn + p["bo"]
        h2 = ln(x, p["ln2_w"], p["ln2_b"])
        pre = h2 @ p["w1"] + p["b1"]
        inter = 0.5 * pre * (1.0 + jax.lax.erf(pre / math.sqrt(2.0)))
        x = x + inter @ p["w2"] + p["b2"]
    x = ln(x, params["final_ln_w"], params["final_ln_b"])
    return x[:, :-1, :].astype(out_dtype), attention_mask[:, :-1].astype(bool)


# ---------------- synthetic weights ----------------
def init_params(key):
    keys = jax.random.split(key, 1 + NUM_LAYERS)

    def dense(k, fan_in, fan_out):
        return jax.random.normal(k, (fan_in, fan_out), jnp.float32) * 0.02

    params = {
        "word_emb": jax.random.normal(keys[0], (VOCAB, HIDDEN), jnp.float32) * 0.02,
        "final_ln_w": jnp.ones((1, HIDDEN), jnp.float32),
        "final_ln_b": jnp.zeros((1, HIDDEN), jnp.float32),
        "layers": [],
    }
    for l in range(NUM_LAYERS):
        lk = jax.random.split(keys[1 + l], 6)
        params["layers"].append({
            "ln1_w": jnp.ones((1, HIDDEN), jnp.float32), "ln1_b": jnp.zeros((1, HIDDEN), jnp.float32),
            "wq": dense(lk[0], HIDDEN, HIDDEN), "bq": jnp.zeros((1, HIDDEN), jnp.float32),
            "wk": dense(lk[1], HIDDEN, HIDDEN), "bk": jnp.zeros((1, HIDDEN), jnp.float32),
            "wv": dense(lk[2], HIDDEN, HIDDEN), "bv": jnp.zeros((1, HIDDEN), jnp.float32),
            "wo": dense(lk[3], HIDDEN, HIDDEN), "bo": jnp.zeros((1, HIDDEN), jnp.float32),
            "ln2_w": jnp.ones((1, HIDDEN), jnp.float32), "ln2_b": jnp.zeros((1, HIDDEN), jnp.float32),
            "w1": dense(lk[4], HIDDEN, INTERMEDIATE), "b1": jnp.zeros((1, INTERMEDIATE), jnp.float32),
            "w2": dense(lk[5], INTERMEDIATE, HIDDEN), "b2": jnp.zeros((1, HIDDEN), jnp.float32),
        })
    return params


if __name__ == "__main__":
    key = jax.random.PRNGKey(0)
    pkey, ikey = jax.random.split(key)
    params = init_params(pkey)

    B, S = 2, 9  # 8 residues + terminal token; forward slices off the final position
    input_ids = jax.random.randint(ikey, (B, S), 4, 24, dtype=jnp.int32)  # amino-acid range
    lengths = jnp.array([S, S - 2], dtype=jnp.int32)                      # second seq is padded
    pos = jnp.arange(S)[None, :]
    attention_mask = (pos < lengths[:, None]).astype(jnp.int32)
    input_ids = jnp.where(attention_mask == 1, input_ids, PAD_TOKEN_ID)

    fwd = jax.jit(protein_1d_encoder_forward)
    out, out_mask = fwd(input_ids, attention_mask, params)
    out = jax.block_until_ready(out)
    out_mask = jax.block_until_ready(out_mask)

    assert out.shape == (B, S - 1, HIDDEN) and out.dtype == jnp.float32
    assert out_mask.shape == (B, S - 1) and out_mask.dtype == jnp.bool_
    assert bool(jnp.all(jnp.isfinite(out)))

    # correctness check vs the pure-f32 reference; tolerance covers the bf16 MXU
    # operands and the approx-reciprocal softmax normalization inside the kernel.
    ref, ref_mask = reference_forward(input_ids, attention_mask, params)
    assert bool(jnp.all(out_mask == ref_mask))
    max_err = float(jnp.max(jnp.abs(out - ref)))
    assert max_err < 5e-2, f"kernel/reference mismatch: max abs err {max_err}"

    print("KERNEL_OK")
</pallas_src>

<mosaic_0001>
module attributes {stable_mosaic.version = 11 : i64} {
  func.func @encoder_kernel(%arg0: i32, %arg1: i32, %arg2: memref<16x32xf32, #tpu.memory_space<vmem>>, %arg3: memref<1x1x16xf32, #tpu.memory_space<vmem>>, %arg4: memref<3x16x32xf32, #tpu.memory_space<vmem>>, %arg5: memref<1x4x32xf32, #tpu.memory_space<vmem>>, %arg6: memref<1x32x96xbf16, #tpu.memory_space<vmem>>, %arg7: memref<1x1x96xf32, #tpu.memory_space<vmem>>, %arg8: memref<1x32x32xbf16, #tpu.memory_space<vmem>>, %arg9: memref<1x1x32xf32, #tpu.memory_space<vmem>>, %arg10: memref<1x32x64xbf16, #tpu.memory_space<vmem>>, %arg11: memref<1x1x64xf32, #tpu.memory_space<vmem>>, %arg12: memref<1x64x32xbf16, #tpu.memory_space<vmem>>, %arg13: memref<1x1x32xf32, #tpu.memory_space<vmem>>, %arg14: memref<2x1x32xf32, #tpu.memory_space<vmem>>, %arg15: memref<16x32xf32, #tpu.memory_space<vmem>>, %arg16: memref<16x32xf32, #tpu.memory_space<vmem>>) attributes {dimension_semantics = [#tpu.dimension_semantics<parallel>, #tpu.dimension_semantics<arbitrary>], iteration_bounds = array<i64: 2, 2>, scalar_prefetch = 0 : i64, scratch_operands = 1 : i64, tpu.core_type = #tpu.core_type<tc>, window_params = [{transform_indices = @transform_0, window_bounds = array<i64: 16, 32>}, {transform_indices = @transform_1, window_bounds = array<i64: 1, 1, 16>}, {pipeline_mode = #tpu.pipeline_mode<synchronous>, transform_indices = @transform_2, window_bounds = array<i64: 3, 16, 32>}, {transform_indices = @transform_3, window_bounds = array<i64: 1, 4, 32>}, {transform_indices = @transform_4, window_bounds = array<i64: 1, 32, 96>}, {transform_indices = @transform_5, window_bounds = array<i64: 1, 1, 96>}, {transform_indices = @transform_6, window_bounds = array<i64: 1, 32, 32>}, {transform_indices = @transform_7, window_bounds = array<i64: 1, 1, 32>}, {transform_indices = @transform_8, window_bounds = array<i64: 1, 32, 64>}, {transform_indices = @transform_9, window_bounds = array<i64: 1, 1, 64>}, {transform_indices = @transform_10, window_bounds = array<i64: 1, 64, 32>}, {transform_indices = @transform_11, window_bounds = array<i64: 1, 1, 32>}, {pipeline_mode = #tpu.pipeline_mode<synchronous>, transform_indices = @transform_12, window_bounds = array<i64: 2, 1, 32>}, {transform_indices = @transform_13, window_bounds = array<i64: 16, 32>}]} {
    %c0_i32 = arith.constant 0 : i32
    %0 = arith.cmpi eq, %arg1, %c0_i32 : i32
    %1 = arith.extui %0 : i1 to i32
    %c0_i32_0 = arith.constant 0 : i32
    %2 = arith.cmpi ne, %1, %c0_i32_0 : i32
    scf.if %2 {
      %c0_81 = arith.constant 0 : index
      %c0_82 = arith.constant 0 : index
      %221 = vector.load %arg2[%c0_81, %c0_82] : memref<16x32xf32, #tpu.memory_space<vmem>>, vector<16x32xf32>
      %c0_83 = arith.constant 0 : index
      %c0_84 = arith.constant 0 : index
      %222 = vector.load %arg15[%c0_83, %c0_84] : memref<16x32xf32, #tpu.memory_space<vmem>>, vector<16x32xf32>
      tpu.vector_store %arg15[%c0_83, %c0_84], %221 {strides = array<i32>} : memref<16x32xf32, #tpu.memory_space<vmem>>, vector<16x32xf32>,
    } else {
    }
    %c0 = arith.constant 0 : index
    %c0_1 = arith.constant 0 : index
    %3 = vector.load %arg15[%c0, %c0_1] : memref<16x32xf32, #tpu.memory_space<vmem>>, vector<16x32xf32>
    %c0_2 = arith.constant 0 : index
    %c0_3 = arith.constant 0 : index
    %c0_4 = arith.constant 0 : index
    %4 = vector.load %arg4[%c0_2, %c0_3, %c0_4] : memref<3x16x32xf32, #tpu.memory_space<vmem>>, vector<1x16x32xf32>
    %5 = vector.shape_cast %4 : vector<1x16x32xf32> to vector<16x32xf32>
    %c1 = arith.constant 1 : index
    %c0_5 = arith.constant 0 : index
    %c0_6 = arith.constant 0 : index
    %6 = vector.load %arg4[%c1, %c0_5, %c0_6] : memref<3x16x32xf32, #tpu.memory_space<vmem>>, vector<1x16x32xf32>
    %7 = vector.shape_cast %6 : vector<1x16x32xf32> to vector<16x32xf32>
    %c2 = arith.constant 2 : index
    %c0_7 = arith.constant 0 : index
    %c0_8 = arith.constant 0 : index
    %8 = vector.load %arg4[%c2, %c0_7, %c0_8] : memref<3x16x32xf32, #tpu.memory_space<vmem>>, vector<1x16x32xf32>
    %9 = vector.shape_cast %8 : vector<1x16x32xf32> to vector<16x32xf32>
    %c0_9 = arith.constant 0 : index
    %c0_10 = arith.constant 0 : index
    %c0_11 = arith.constant 0 : index
    %10 = vector.load %arg5[%c0_9, %c0_10, %c0_11] : memref<1x4x32xf32, #tpu.memory_space<vmem>>, vector<1x4x32xf32>
    %11 = vector.shape_cast %10 : vector<1x4x32xf32> to vector<4x32xf32>
    %c0_12 = arith.constant 0 : index
    %c0_13 = arith.constant 0 : index
    %c0_14 = arith.constant 0 : index
    %12 = vector.load %arg3[%c0_12, %c0_13, %c0_14] : memref<1x1x16xf32, #tpu.memory_space<vmem>>, vector<1x1x16xf32>
    %13 = vector.shape_cast %12 : vector<1x1x16xf32> to vector<1x16xf32>
    %14 = vector.extract_strided_slice %11 {offsets = [0, 0], sizes = [1, 32], strides = [1, 1]} : vector<4x32xf32> to vector<1x32xf32>
    %15 = vector.extract_strided_slice %11 {offsets = [1, 0], sizes = [1, 32], strides = [1, 1]} : vector<4x32xf32> to vector<1x32xf32>
    %cst = arith.constant dense<0.000000e+00> : vector<16xf32>
    %16 = vector.multi_reduction <add>, %3, %cst [1] : vector<16x32xf32> to vector<16xf32>
    %17 = vector.shape_cast %16 : vector<16xf32> to vector<16x1xf32>
    %cst_15 = arith.constant 3.200000e+01 : f32
    %18 = vector.broadcast %cst_15 : f32 to vector<16x1xf32>
    %19 = arith.divf %17, %18 : vector<16x1xf32>
    %20 = vector.broadcast %19 : vector<16x1xf32> to vector<16x32xf32>
    %21 = arith.subf %3, %20 : vector<16x32xf32>
    %22 = arith.mulf %21, %21 : vector<16x32xf32>
    %cst_16 = arith.constant dense<0.000000e+00> : vector<16xf32>
    %23 = vector.multi_reduction <add>, %22, %cst_16 [1] : vector<16x32xf32> to vector<16xf32>
    %24 = vector.shape_cast %23 : vector<16xf32> to vector<16x1xf32>
    %cst_17 = arith.constant 3.200000e+01 : f32
    %25 = vector.broadcast %cst_17 : f32 to vector<16x1xf32>
    %26 = arith.divf %24, %25 : vector<16x1xf32>
    %27 = vector.broadcast %19 : vector<16x1xf32> to vector<16x32xf32>
    %28 = arith.subf %3, %27 : vector<16x32xf32>
    %cst_18 = arith.constant 9.99999974E-6 : f32
    %29 = vector.broadcast %cst_18 : f32 to vector<16x1xf32>
    %30 = arith.addf %26, %29 : vector<16x1xf32>
    %31 = math.rsqrt %30 : vector<16x1xf32>
    %32 = vector.broadcast %31 : vector<16x1xf32> to vector<16x32xf32>
    %33 = arith.mulf %28, %32 : vector<16x32xf32>
    %34 = vector.broadcast %14 : vector<1x32xf32> to vector<16x32xf32>
    %35 = arith.mulf %33, %34 : vector<16x32xf32>
    %36 = vector.broadcast %15 : vector<1x32xf32> to vector<16x32xf32>
    %37 = arith.addf %35, %36 : vector<16x32xf32>
    %38 = arith.truncf %37 : vector<16x32xf32> to vector<16x32xbf16>
    %c0_19 = arith.constant 0 : index
    %c0_20 = arith.constant 0 : index
    %c0_21 = arith.constant 0 : index
    %39 = vector.load %arg6[%c0_19, %c0_20, %c0_21] : memref<1x32x96xbf16, #tpu.memory_space<vmem>>, vector<1x32x96xbf16>
    %40 = vector.shape_cast %39 : vector<1x32x96xbf16> to vector<32x96xbf16>
    %cst_22 = arith.constant dense<0.000000e+00> : vector<16x96xf32>
    %41 = tpu.matmul %38, %40, %cst_22 {dimension_numbers = #tpu.dot_dimension_numbers<[1], [0], [0], [1], [0, 0, 1, 1], [], []>} : vector<16x32xbf16>, vector<32x96xbf16>, vector<16x96xf32> -> vector<16x96xf32>
    %c0_23 = arith.constant 0 : index
    %c0_24 = arith.constant 0 : index
    %c0_25 = arith.constant 0 : index
    %42 = vector.load %arg7[%c0_23, %c0_24, %c0_25] : memref<1x1x96xf32, #tpu.memory_space<vmem>>, vector<1x1x96xf32>
    %43 = vector.shape_cast %42 : vector<1x1x96xf32> to vector<1x96xf32>
    %44 = vector.broadcast %43 : vector<1x96xf32> to vector<16x96xf32>
    %45 = arith.addf %41, %44 : vector<16x96xf32>
    %46 = vector.extract_strided_slice %45 {offsets = [0, 0], sizes = [16, 32], strides = [1, 1]} : vector<16x96xf32> to vector<16x32xf32>
    %47 = arith.mulf %46, %5 : vector<16x32xf32>
    %48 = vector.extract_strided_slice %46 {offsets = [0, 4], sizes = [16, 28], strides = [1, 1]} : vector<16x32xf32> to vector<16x28xf32>
    %49 = vector.extract_strided_slice %46 {offsets = [0, 0], sizes = [16, 4], strides = [1, 1]} : vector<16x32xf32> to vector<16x4xf32>
    %50 = tpu.concatenate %48, %49 in 1 : vector<16x28xf32>, vector<16x4xf32> -> vector<16x32xf32>
    %51 = arith.mulf %50, %7 : vector<16x32xf32>
    %52 = arith.addf %47, %51 : vector<16x32xf32>
    %53 = vector.extract_strided_slice %46 {offsets = [0, 28], sizes = [16, 4], strides = [1, 1]} : vector<16x32xf32> to vector<16x4xf32>
    %54 = vector.extract_strided_slice %46 {offsets = [0, 0], sizes = [16, 28], strides = [1, 1]} : vector<16x32xf32> to vector<16x28xf32>
    %55 = tpu.concatenate %53, %54 in 1 : vector<16x4xf32>, vector<16x28xf32> -> vector<16x32xf32>
    %56 = arith.mulf %55, %9 : vector<16x32xf32>
    %57 = arith.addf %52, %56 : vector<16x32xf32>
    %58 = vector.extract_strided_slice %45 {offsets = [0, 32], sizes = [16, 32], strides = [1, 1]} : vector<16x96xf32> to vector<16x32xf32>
    %59 = arith.mulf %58, %5 : vector<16x32xf32>
    %60 = vector.extract_strided_slice %58 {offsets = [0, 4], sizes = [16, 28], strides = [1, 1]} : vector<16x32xf32> to vector<16x28xf32>
    %61 = vector.extract_strided_slice %58 {offsets = [0, 0], sizes = [16, 4], strides = [1, 1]} : vector<16x32xf32> to vector<16x4xf32>
    %62 = tpu.concatenate %60, %61 in 1 : vector<16x28xf32>, vector<16x4xf32> -> vector<16x32xf32>
    %63 = arith.mulf %62, %7 : vector<16x32xf32>
    %64 = arith.addf %59, %63 : vector<16x32xf32>
    %65 = vector.extract_strided_slice %58 {offsets = [0, 28], sizes = [16, 4], strides = [1, 1]} : vector<16x32xf32> to vector<16x4xf32>
    %66 = vector.extract_strided_slice %58 {offsets = [0, 0], sizes = [16, 28], strides = [1, 1]} : vector<16x32xf32> to vector<16x28xf32>
    %67 = tpu.concatenate %65, %66 in 1 : vector<16x4xf32>, vector<16x28xf32> -> vector<16x32xf32>
    %68 = arith.mulf %67, %9 : vector<16x32xf32>
    %69 = arith.addf %64, %68 : vector<16x32xf32>
    %70 = vector.extract_strided_slice %45 {offsets = [0, 64], sizes = [16, 32], strides = [1, 1]} : vector<16x96xf32> to vector<16x32xf32>
    %71 = arith.truncf %70 : vector<16x32xf32> to vector<16x32xbf16>
    %72 = vector.extract_strided_slice %57 {offsets = [0, 0], sizes = [16, 8], strides = [1, 1]} : vector<16x32xf32> to vector<16x8xf32>
    %73 = arith.truncf %72 : vector<16x8xf32> to vector<16x8xbf16>
    %74 = vector.extract_strided_slice %69 {offsets = [0, 0], sizes = [16, 8], strides = [1, 1]} : vector<16x32xf32> to vector<16x8xf32>
    %75 = arith.truncf %74 : vector<16x8xf32> to vector<16x8xbf16>
    %cst_26 = arith.constant dense<0.000000e+00> : vector<16x16xf32>
    %76 = tpu.matmul %73, %75, %cst_26 {dimension_numbers = #tpu.dot_dimension_numbers<[1], [1], [0], [0], [0, 0, 1, 0], [], []>} : vector<16x8xbf16>, vector<16x8xbf16>, vector<16x16xf32> -> vector<16x16xf32>
    %77 = vector.broadcast %13 : vector<1x16xf32> to vector<16x16xf32>
    %78 = arith.addf %76, %77 : vector<16x16xf32>
    %cst_27 = arith.constant dense<0xFF800000> : vector<16xf32>
    %79 = vector.multi_reduction <maximumf>, %78, %cst_27 [1] : vector<16x16xf32> to vector<16xf32>
    %80 = vector.shape_cast %79 : vector<16xf32> to vector<16x1xf32>
    %81 = vector.broadcast %80 : vector<16x1xf32> to vector<16x16xf32>
    %82 = arith.subf %78, %81 : vector<16x16xf32>
    %83 = math.exp %82 : vector<16x16xf32>
    %cst_28 = arith.constant dense<0.000000e+00> : vector<16xf32>
    %84 = vector.multi_reduction <add>, %83, %cst_28 [1] : vector<16x16xf32> to vector<16xf32>
    %85 = vector.shape_cast %84 : vector<16xf32> to vector<16x1xf32>
    %86 = tpu.reciprocal %85 {approx = true} : vector<16x1xf32> -> vector<16x1xf32>
    %87 = vector.broadcast %86 : vector<16x1xf32> to vector<16x16xf32>
    %88 = arith.mulf %83, %87 : vector<16x16xf32>
    %89 = arith.truncf %88 : vector<16x16xf32> to vector<16x16xbf16>
    %90 = vector.extract_strided_slice %71 {offsets = [0, 0], sizes = [16, 8], strides = [1, 1]} : vector<16x32xbf16> to vector<16x8xbf16>
    %cst_29 = arith.constant dense<0.000000e+00> : vector<16x8xf32>
    %91 = tpu.matmul %89, %90, %cst_29 {dimension_numbers = #tpu.dot_dimension_numbers<[1], [0], [0], [1], [0, 0, 1, 1], [], []>} : vector<16x16xbf16>, vector<16x8xbf16>, vector<16x8xf32> -> vector<16x8xf32>
    %c0_30 = arith.constant 0 : index
    %c0_31 = arith.constant 0 : index
    %92 = vector.load %arg16[%c0_30, %c0_31] : memref<16x32xf32, #tpu.memory_space<vmem>>, vector<16x8xf32>
    tpu.vector_store %arg16[%c0_30, %c0_31], %91 {strides = array<i32>} : memref<16x32xf32, #tpu.memory_space<vmem>>, vector<16x8xf32>,
    %93 = vector.extract_strided_slice %57 {offsets = [0, 8], sizes = [16, 8], strides = [1, 1]} : vector<16x32xf32> to vector<16x8xf32>
    %94 = arith.truncf %93 : vector<16x8xf32> to vector<16x8xbf16>
    %95 = vector.extract_strided_slice %69 {offsets = [0, 8], sizes = [16, 8], strides = [1, 1]} : vector<16x32xf32> to vector<16x8xf32>
    %96 = arith.truncf %95 : vector<16x8xf32> to vector<16x8xbf16>
    %cst_32 = arith.constant dense<0.000000e+00> : vector<16x16xf32>
    %97 = tpu.matmul %94, %96, %cst_32 {dimension_numbers = #tpu.dot_dimension_numbers<[1], [1], [0], [0], [0, 0, 1, 0], [], []>} : vector<16x8xbf16>, vector<16x8xbf16>, vector<16x16xf32> -> vector<16x16xf32>
    %98 = vector.broadcast %13 : vector<1x16xf32> to vector<16x16xf32>
    %99 = arith.addf %97, %98 : vector<16x16xf32>
    %cst_33 = arith.constant dense<0xFF800000> : vector<16xf32>
    %100 = vector.multi_reduction <maximumf>, %99, %cst_33 [1] : vector<16x16xf32> to vector<16xf32>
    %101 = vector.shape_cast %100 : vector<16xf32> to vector<16x1xf32>
    %102 = vector.broadcast %101 : vector<16x1xf32> to vector<16x16xf32>
    %103 = arith.subf %99, %102 : vector<16x16xf32>
    %104 = math.exp %103 : vector<16x16xf32>
    %cst_34 = arith.constant dense<0.000000e+00> : vector<16xf32>
    %105 = vector.multi_reduction <add>, %104, %cst_34 [1] : vector<16x16xf32> to vector<16xf32>
    %106 = vector.shape_cast %105 : vector<16xf32> to vector<16x1xf32>
    %107 = tpu.reciprocal %106 {approx = true} : vector<16x1xf32> -> vector<16x1xf32>
    %108 = vector.broadcast %107 : vector<16x1xf32> to vector<16x16xf32>
    %109 = arith.mulf %104, %108 : vector<16x16xf32>
    %110 = arith.truncf %109 : vector<16x16xf32> to vector<16x16xbf16>
    %111 = vector.extract_strided_slice %71 {offsets = [0, 8], sizes = [16, 8], strides = [1, 1]} : vector<16x32xbf16> to vector<16x8xbf16>
    %cst_35 = arith.constant dense<0.000000e+00> : vector<16x8xf32>
    %112 = tpu.matmul %110, %111, %cst_35 {dimension_numbers = #tpu.dot_dimension_numbers<[1], [0], [0], [1], [0, 0, 1, 1], [], []>} : vector<16x16xbf16>, vector<16x8xbf16>, vector<16x8xf32> -> vector<16x8xf32>
    %c0_36 = arith.constant 0 : index
    %c8 = arith.constant 8 : index
    %113 = vector.load %arg16[%c0_36, %c8] : memref<16x32xf32, #tpu.memory_space<vmem>>, vector<16x8xf32>
    tpu.vector_store %arg16[%c0_36, %c8], %112 {strides = array<i32>} : memref<16x32xf32, #tpu.memory_space<vmem>>, vector<16x8xf32>,
    %114 = vector.extract_strided_slice %57 {offsets = [0, 16], sizes = [16, 8], strides = [1, 1]} : vector<16x32xf32> to vector<16x8xf32>
    %115 = arith.truncf %114 : vector<16x8xf32> to vector<16x8xbf16>
    %116 = vector.extract_strided_slice %69 {offsets = [0, 16], sizes = [16, 8], strides = [1, 1]} : vector<16x32xf32> to vector<16x8xf32>
    %117 = arith.truncf %116 : vector<16x8xf32> to vector<16x8xbf16>
    %cst_37 = arith.constant dense<0.000000e+00> : vector<16x16xf32>
    %118 = tpu.matmul %115, %117, %cst_37 {dimension_numbers = #tpu.dot_dimension_numbers<[1], [1], [0], [0], [0, 0, 1, 0], [], []>} : vector<16x8xbf16>, vector<16x8xbf16>, vector<16x16xf32> -> vector<16x16xf32>
    %119 = vector.broadcast %13 : vector<1x16xf32> to vector<16x16xf32>
    %120 = arith.addf %118, %119 : vector<16x16xf32>
    %cst_38 = arith.constant dense<0xFF800000> : vector<16xf32>
    %121 = vector.multi_reduction <maximumf>, %120, %cst_38 [1] : vector<16x16xf32> to vector<16xf32>
    %122 = vector.shape_cast %121 : vector<16xf32> to vector<16x1xf32>
    %123 = vector.broadcast %122 : vector<16x1xf32> to vector<16x16xf32>
    %124 = arith.subf %120, %123 : vector<16x16xf32>
    %125 = math.exp %124 : vector<16x16xf32>
    %cst_39 = arith.constant dense<0.000000e+00> : vector<16xf32>
    %126 = vector.multi_reduction <add>, %125, %cst_39 [1] : vector<16x16xf32> to vector<16xf32>
    %127 = vector.shape_cast %126 : vector<16xf32> to vector<16x1xf32>
    %128 = tpu.reciprocal %127 {approx = true} : vector<16x1xf32> -> vector<16x1xf32>
    %129 = vector.broadcast %128 : vector<16x1xf32> to vector<16x16xf32>
    %130 = arith.mulf %125, %129 : vector<16x16xf32>
    %131 = arith.truncf %130 : vector<16x16xf32> to vector<16x16xbf16>
    %132 = vector.extract_strided_slice %71 {offsets = [0, 16], sizes = [16, 8], strides = [1, 1]} : vector<16x32xbf16> to vector<16x8xbf16>
    %cst_40 = arith.constant dense<0.000000e+00> : vector<16x8xf32>
    %133 = tpu.matmul %131, %132, %cst_40 {dimension_numbers = #tpu.dot_dimension_numbers<[1], [0], [0], [1], [0, 0, 1, 1], [], []>} : vector<16x16xbf16>, vector<16x8xbf16>, vector<16x8xf32> -> vector<16x8xf32>
    %c0_41 = arith.constant 0 : index
    %c16 = arith.constant 16 : index
    %134 = vector.load %arg16[%c0_41, %c16] : memref<16x32xf32, #tpu.memory_space<vmem>>, vector<16x8xf32>
    tpu.vector_store %arg16[%c0_41, %c16], %133 {strides = array<i32>} : memref<16x32xf32, #tpu.memory_space<vmem>>, vector<16x8xf32>,
    %135 = vector.extract_strided_slice %57 {offsets = [0, 24], sizes = [16, 8], strides = [1, 1]} : vector<16x32xf32> to vector<16x8xf32>
    %136 = arith.truncf %135 : vector<16x8xf32> to vector<16x8xbf16>
    %137 = vector.extract_strided_slice %69 {offsets = [0, 24], sizes = [16, 8], strides = [1, 1]} : vector<16x32xf32> to vector<16x8xf32>
    %138 = arith.truncf %137 : vector<16x8xf32> to vector<16x8xbf16>
    %cst_42 = arith.constant dense<0.000000e+00> : vector<16x16xf32>
    %139 = tpu.matmul %136, %138, %cst_42 {dimension_numbers = #tpu.dot_dimension_numbers<[1], [1], [0], [0], [0, 0, 1, 0], [], []>} : vector<16x8xbf16>, vector<16x8xbf16>, vector<16x16xf32> -> vector<16x16xf32>
    %140 = vector.broadcast %13 : vector<1x16xf32> to vector<16x16xf32>
    %141 = arith.addf %139, %140 : vector<16x16xf32>
    %cst_43 = arith.constant dense<0xFF800000> : vector<16xf32>
    %142 = vector.multi_reduction <maximumf>, %141, %cst_43 [1] : vector<16x16xf32> to vector<16xf32>
    %143 = vector.shape_cast %142 : vector<16xf32> to vector<16x1xf32>
    %144 = vector.broadcast %143 : vector<16x1xf32> to vector<16x16xf32>
    %145 = arith.subf %141, %144 : vector<16x16xf32>
    %146 = math.exp %145 : vector<16x16xf32>
    %cst_44 = arith.constant dense<0.000000e+00> : vector<16xf32>
    %147 = vector.multi_reduction <add>, %146, %cst_44 [1] : vector<16x16xf32> to vector<16xf32>
    %148 = vector.shape_cast %147 : vector<16xf32> to vector<16x1xf32>
    %149 = tpu.reciprocal %148 {approx = true} : vector<16x1xf32> -> vector<16x1xf32>
    %150 = vector.broadcast %149 : vector<16x1xf32> to vector<16x16xf32>
    %151 = arith.mulf %146, %150 : vector<16x16xf32>
    %152 = arith.truncf %151 : vector<16x16xf32> to vector<16x16xbf16>
    %153 = vector.extract_strided_slice %71 {offsets = [0, 24], sizes = [16, 8], strides = [1, 1]} : vector<16x32xbf16> to vector<16x8xbf16>
    %cst_45 = arith.constant dense<0.000000e+00> : vector<16x8xf32>
    %154 = tpu.matmul %152, %153, %cst_45 {dimension_numbers = #tpu.dot_dimension_numbers<[1], [0], [0], [1], [0, 0, 1, 1], [], []>} : vector<16x16xbf16>, vector<16x8xbf16>, vector<16x8xf32> -> vector<16x8xf32>
    %c0_46 = arith.constant 0 : index
    %c24 = arith.constant 24 : index
    %155 = vector.load %arg16[%c0_46, %c24] : memref<16x32xf32, #tpu.memory_space<vmem>>, vector<16x8xf32>
    tpu.vector_store %arg16[%c0_46, %c24], %154 {strides = array<i32>} : memref<16x32xf32, #tpu.memory_space<vmem>>, vector<16x8xf32>,
    %c0_47 = arith.constant 0 : index
    %c0_48 = arith.constant 0 : index
    %156 = vector.load %arg16[%c0_47, %c0_48] : memref<16x32xf32, #tpu.memory_space<vmem>>, vector<16x32xf32>
    %157 = arith.truncf %156 : vector<16x32xf32> to vector<16x32xbf16>
    %c0_49 = arith.constant 0 : index
    %c0_50 = arith.constant 0 : index
    %c0_51 = arith.constant 0 : index
    %158 = vector.load %arg8[%c0_49, %c0_50, %c0_51] : memref<1x32x32xbf16, #tpu.memory_space<vmem>>, vector<1x32x32xbf16>
    %159 = vector.shape_cast %158 : vector<1x32x32xbf16> to vector<32x32xbf16>
    %cst_52 = arith.constant dense<0.000000e+00> : vector<16x32xf32>
    %160 = tpu.matmul %157, %159, %cst_52 {dimension_numbers = #tpu.dot_dimension_numbers<[1], [0], [0], [1], [0, 0, 1, 1], [], []>} : vector<16x32xbf16>, vector<32x32xbf16>, vector<16x32xf32> -> vector<16x32xf32>
    %161 = arith.addf %3, %160 : vector<16x32xf32>
    %c0_53 = arith.constant 0 : index
    %c0_54 = arith.constant 0 : index
    %c0_55 = arith.constant 0 : index
    %162 = vector.load %arg9[%c0_53, %c0_54, %c0_55] : memref<1x1x32xf32, #tpu.memory_space<vmem>>, vector<1x1x32xf32>
    %163 = vector.shape_cast %162 : vector<1x1x32xf32> to vector<1x32xf32>
    %164 = vector.broadcast %163 : vector<1x32xf32> to vector<16x32xf32>
    %165 = arith.addf %161, %164 : vector<16x32xf32>
    %166 = vector.extract_strided_slice %11 {offsets = [2, 0], sizes = [1, 32], strides = [1, 1]} : vector<4x32xf32> to vector<1x32xf32>
    %167 = vector.extract_strided_slice %11 {offsets = [3, 0], sizes = [1, 32], strides = [1, 1]} : vector<4x32xf32> to vector<1x32xf32>
    %cst_56 = arith.constant dense<0.000000e+00> : vector<16xf32>
    %168 = vector.multi_reduction <add>, %165, %cst_56 [1] : vector<16x32xf32> to vector<16xf32>
    %169 = vector.shape_cast %168 : vector<16xf32> to vector<16x1xf32>
    %cst_57 = arith.constant 3.200000e+01 : f32
    %170 = vector.broadcast %cst_57 : f32 to vector<16x1xf32>
    %171 = arith.divf %169, %170 : vector<16x1xf32>
    %172 = vector.broadcast %171 : vector<16x1xf32> to vector<16x32xf32>
    %173 = arith.subf %165, %172 : vector<16x32xf32>
    %174 = arith.mulf %173, %173 : vector<16x32xf32>
    %cst_58 = arith.constant dense<0.000000e+00> : vector<16xf32>
    %175 = vector.multi_reduction <add>, %174, %cst_58 [1] : vector<16x32xf32> to vector<16xf32>
    %176 = vector.shape_cast %175 : vector<16xf32> to vector<16x1xf32>
    %cst_59 = arith.constant 3.200000e+01 : f32
    %177 = vector.broadcast %cst_59 : f32 to vector<16x1xf32>
    %178 = arith.divf %176, %177 : vector<16x1xf32>
    %179 = vector.broadcast %171 : vector<16x1xf32> to vector<16x32xf32>
    %180 = arith.subf %165, %179 : vector<16x32xf32>
    %cst_60 = arith.constant 9.99999974E-6 : f32
    %181 = vector.broadcast %cst_60 : f32 to vector<16x1xf32>
    %182 = arith.addf %178, %181 : vector<16x1xf32>
    %183 = math.rsqrt %182 : vector<16x1xf32>
    %184 = vector.broadcast %183 : vector<16x1xf32> to vector<16x32xf32>
    %185 = arith.mulf %180, %184 : vector<16x32xf32>
    %186 = vector.broadcast %166 : vector<1x32xf32> to vector<16x32xf32>
    %187 = arith.mulf %185, %186 : vector<16x32xf32>
    %188 = vector.broadcast %167 : vector<1x32xf32> to vector<16x32xf32>
    %189 = arith.addf %187, %188 : vector<16x32xf32>
    %190 = arith.truncf %189 : vector<16x32xf32> to vector<16x32xbf16>
    %c0_61 = arith.constant 0 : index
    %c0_62 = arith.constant 0 : index
    %c0_63 = arith.constant 0 : index
    %191 = vector.load %arg10[%c0_61, %c0_62, %c0_63] : memref<1x32x64xbf16, #tpu.memory_space<vmem>>, vector<1x32x64xbf16>
    %192 = vector.shape_cast %191 : vector<1x32x64xbf16> to vector<32x64xbf16>
    %cst_64 = arith.constant dense<0.000000e+00> : vector<16x64xf32>
    %193 = tpu.matmul %190, %192, %cst_64 {dimension_numbers = #tpu.dot_dimension_numbers<[1], [0], [0], [1], [0, 0, 1, 1], [], []>} : vector<16x32xbf16>, vector<32x64xbf16>, vector<16x64xf32> -> vector<16x64xf32>
    %c0_65 = arith.constant 0 : index
    %c0_66 = arith.constant 0 : index
    %c0_67 = arith.constant 0 : index
    %194 = vector.load %arg11[%c0_65, %c0_66, %c0_67] : memref<1x1x64xf32, #tpu.memory_space<vmem>>, vector<1x1x64xf32>
    %195 = vector.shape_cast %194 : vector<1x1x64xf32> to vector<1x64xf32>
    %196 = vector.broadcast %195 : vector<1x64xf32> to vector<16x64xf32>
    %197 = arith.addf %193, %196 : vector<16x64xf32>
    %cst_68 = arith.constant 5.000000e-01 : f32
    %198 = vector.broadcast %cst_68 : f32 to vector<16x64xf32>
    %199 = arith.mulf %198, %197 : vector<16x64xf32>
    %cst_69 = arith.constant 1.41421354 : f32
    %200 = vector.broadcast %cst_69 : f32 to vector<16x64xf32>
    %201 = arith.divf %197, %200 : vector<16x64xf32>
    %202 = math.erf %201 : vector<16x64xf32>
    %cst_70 = arith.constant 1.000000e+00 : f32
    %203 = vector.broadcast %cst_70 : f32 to vector<16x64xf32>
    %204 = arith.addf %203, %202 : vector<16x64xf32>
    %205 = arith.mulf %199, %204 : vector<16x64xf32>
    %206 = arith.truncf %205 : vector<16x64xf32> to vector<16x64xbf16>
    %c0_71 = arith.constant 0 : index
    %c0_72 = arith.constant 0 : index
    %c0_73 = arith.constant 0 : index
    %207 = vector.load %arg12[%c0_71, %c0_72, %c0_73] : memref<1x64x32xbf16, #tpu.memory_space<vmem>>, vector<1x64x32xbf16>
    %208 = vector.shape_cast %207 : vector<1x64x32xbf16> to vector<64x32xbf16>
    %cst_74 = arith.constant dense<0.000000e+00> : vector<16x32xf32>
    %209 = tpu.matmul %206, %208, %cst_74 {dimension_numbers = #tpu.dot_dimension_numbers<[1], [0], [0], [1], [0, 0, 1, 1], [], []>} : vector<16x64xbf16>, vector<64x32xbf16>, vector<16x32xf32> -> vector<16x32xf32>
    %210 = arith.addf %165, %209 : vector<16x32xf32>
    %c0_75 = arith.constant 0 : index
    %c0_76 = arith.constant 0 : index
    %c0_77 = arith.constant 0 : index
    %211 = vector.load %arg13[%c0_75, %c0_76, %c0_77] : memref<1x1x32xf32, #tpu.memory_space<vmem>>, vector<1x1x32xf32>
    %212 = vector.shape_cast %211 : vector<1x1x32xf32> to vector<1x32xf32>
    %213 = vector.broadcast %212 : vector<1x32xf32> to vector<16x32xf32>
    %214 = arith.addf %210, %213 : vector<16x32xf32>
    %c1_i32 = arith.constant 1 : i32
    %215 = arith.cmpi slt, %arg1, %c1_i32 : i32
    %216 = arith.extui %215 : i1 to i32
    %c0_i32_78 = arith.constant 0 : i32
    %217 = arith.cmpi ne, %216, %c0_i32_78 : i32
    scf.if %217 {
      %c0_81 = arith.constant 0 : index
      %c0_82 = arith.constant 0 : index
      %221 = vector.load %arg15[%c0_81, %c0_82] : memref<16x32xf32, #tpu.memory_space<vmem>>, vector<16x32xf32>
      tpu.vector_store %arg15[%c0_81, %c0_82], %214 {strides = array<i32>} : memref<16x32xf32, #tpu.memory_space<vmem>>, vector<16x32xf32>,
    } else {
    }
    %c1_i32_79 = arith.constant 1 : i32
    %218 = arith.cmpi eq, %arg1, %c1_i32_79 : i32
    %219 = arith.extui %218 : i1 to i32
    %c0_i32_80 = arith.constant 0 : i32
    %220 = arith.cmpi ne, %219, %c0_i32_80 : i32
    scf.if %220 {
      %c0_81 = arith.constant 0 : index
      %c0_82 = arith.constant 0 : index
      %c0_83 = arith.constant 0 : index
      %221 = vector.load %arg14[%c0_81, %c0_82, %c0_83] : memref<2x1x32xf32, #tpu.memory_space<vmem>>, vector<1x1x32xf32>
      %222 = vector.shape_cast %221 : vector<1x1x32xf32> to vector<1x32xf32>
      %c1_84 = arith.constant 1 : index
      %c0_85 = arith.constant 0 : index
      %c0_86 = arith.constant 0 : index
      %223 = vector.load %arg14[%c1_84, %c0_85, %c0_86] : memref<2x1x32xf32, #tpu.memory_space<vmem>>, vector<1x1x32xf32>
      %224 = vector.shape_cast %223 : vector<1x1x32xf32> to vector<1x32xf32>
      %cst_87 = arith.constant dense<0.000000e+00> : vector<16xf32>
      %225 = vector.multi_reduction <add>, %214, %cst_87 [1] : vector<16x32xf32> to vector<16xf32>
      %226 = vector.shape_cast %225 : vector<16xf32> to vector<16x1xf32>
      %cst_88 = arith.constant 3.200000e+01 : f32
      %227 = vector.broadcast %cst_88 : f32 to vector<16x1xf32>
      %228 = arith.divf %226, %227 : vector<16x1xf32>
      %229 = vector.broadcast %228 : vector<16x1xf32> to vector<16x32xf32>
      %230 = arith.subf %214, %229 : vector<16x32xf32>
      %231 = arith.mulf %230, %230 : vector<16x32xf32>
      %cst_89 = arith.constant dense<0.000000e+00> : vector<16xf32>
      %232 = vector.multi_reduction <add>, %231, %cst_89 [1] : vector<16x32xf32> to vector<16xf32>
      %233 = vector.shape_cast %232 : vector<16xf32> to vector<16x1xf32>
      %cst_90 = arith.constant 3.200000e+01 : f32
      %234 = vector.broadcast %cst_90 : f32 to vector<16x1xf32>
      %235 = arith.divf %233, %234 : vector<16x1xf32>
      %236 = vector.broadcast %228 : vector<16x1xf32> to vector<16x32xf32>
      %237 = arith.subf %214, %236 : vector<16x32xf32>
      %cst_91 = arith.constant 9.99999974E-6 : f32
      %238 = vector.broadcast %cst_91 : f32 to vector<16x1xf32>
      %239 = arith.addf %235, %238 : vector<16x1xf32>
      %240 = math.rsqrt %239 : vector<16x1xf32>
      %241 = vector.broadcast %240 : vector<16x1xf32> to vector<16x32xf32>
      %242 = arith.mulf %237, %241 : vector<16x32xf32>
      %243 = vector.broadcast %222 : vector<1x32xf32> to vector<16x32xf32>
      %244 = arith.mulf %242, %243 : vector<16x32xf32>
      %245 = vector.broadcast %224 : vector<1x32xf32> to vector<16x32xf32>
      %246 = arith.addf %244, %245 : vector<16x32xf32>
      %c0_92 = arith.constant 0 : index
      %c0_93 = arith.constant 0 : index
      %247 = vector.load %arg15[%c0_92, %c0_93] : memref<16x32xf32, #tpu.memory_space<vmem>>, vector<16x32xf32>
      tpu.vector_store %arg15[%c0_92, %c0_93], %246 {strides = array<i32>} : memref<16x32xf32, #tpu.memory_space<vmem>>, vector<16x32xf32>,
    } else {
    }
    return
  }
  func.func @transform_0(%arg0: i32, %arg1: i32) -> (i32, i32) {
    %c0_i32 = arith.constant 0 : i32
    %c0_i32_0 = arith.constant 0 : i32
    return %arg0, %c0_i32 : i32, i32
  }
  func.func @transform_1(%arg0: i32, %arg1: i32) -> (i32, i32, i32) {
    %c0_i32 = arith.constant 0 : i32
    %c0_i32_0 = arith.constant 0 : i32
    %c0_i32_1 = arith.constant 0 : i32
    return %arg0, %c0_i32, %c0_i32_0 : i32, i32, i32
  }
  func.func @transform_2(%arg0: i32, %arg1: i32) -> (i32, i32, i32) {
    %c0_i32 = arith.constant 0 : i32
    %c0_i32_0 = arith.constant 0 : i32
    %c0_i32_1 = arith.constant 0 : i32
    %c0_i32_2 = arith.constant 0 : i32
    return %c0_i32, %c0_i32_0, %c0_i32_1 : i32, i32, i32
  }
  func.func @transform_3(%arg0: i32, %arg1: i32) -> (i32, i32, i32) {
    %c0_i32 = arith.constant 0 : i32
    %c0_i32_0 = arith.constant 0 : i32
    %c0_i32_1 = arith.constant 0 : i32
    return %arg1, %c0_i32, %c0_i32_0 : i32, i32, i32
  }
  func.func @transform_4(%arg0: i32, %arg1: i32) -> (i32, i32, i32) {
    %c0_i32 = arith.constant 0 : i32
    %c0_i32_0 = arith.constant 0 : i32
    %c0_i32_1 = arith.constant 0 : i32
    return %arg1, %c0_i32, %c0_i32_0 : i32, i32, i32
  }
  func.func @transform_5(%arg0: i32, %arg1: i32) -> (i32, i32, i32) {
    %c0_i32 = arith.constant 0 : i32
    %c0_i32_0 = arith.constant 0 : i32
    %c0_i32_1 = arith.constant 0 : i32
    return %arg1, %c0_i32, %c0_i32_0 : i32, i32, i32
  }
  func.func @transform_6(%arg0: i32, %arg1: i32) -> (i32, i32, i32) {
    %c0_i32 = arith.constant 0 : i32
    %c0_i32_0 = arith.constant 0 : i32
    %c0_i32_1 = arith.constant 0 : i32
    return %arg1, %c0_i32, %c0_i32_0 : i32, i32, i32
  }
  func.func @transform_7(%arg0: i32, %arg1: i32) -> (i32, i32, i32) {
    %c0_i32 = arith.constant 0 : i32
    %c0_i32_0 = arith.constant 0 : i32
    %c0_i32_1 = arith.constant 0 : i32
    return %arg1, %c0_i32, %c0_i32_0 : i32, i32, i32
  }
  func.func @transform_8(%arg0: i32, %arg1: i32) -> (i32, i32, i32) {
    %c0_i32 = arith.constant 0 : i32
    %c0_i32_0 = arith.constant 0 : i32
    %c0_i32_1 = arith.constant 0 : i32
    return %arg1, %c0_i32, %c0_i32_0 : i32, i32, i32
  }
  func.func @transform_9(%arg0: i32, %arg1: i32) -> (i32, i32, i32) {
    %c0_i32 = arith.constant 0 : i32
    %c0_i32_0 = arith.constant 0 : i32
    %c0_i32_1 = arith.constant 0 : i32
    return %arg1, %c0_i32, %c0_i32_0 : i32, i32, i32
  }
  func.func @transform_10(%arg0: i32, %arg1: i32) -> (i32, i32, i32) {
    %c0_i32 = arith.constant 0 : i32
    %c0_i32_0 = arith.constant 0 : i32
    %c0_i32_1 = arith.constant 0 : i32
    return %arg1, %c0_i32, %c0_i32_0 : i32, i32, i32
  }
  func.func @transform_11(%arg0: i32, %arg1: i32) -> (i32, i32, i32) {
    %c0_i32 = arith.constant 0 : i32
    %c0_i32_0 = arith.constant 0 : i32
    %c0_i32_1 = arith.constant 0 : i32
    return %arg1, %c0_i32, %c0_i32_0 : i32, i32, i32
  }
  func.func @transform_12(%arg0: i32, %arg1: i32) -> (i32, i32, i32) {
    %c0_i32 = arith.constant 0 : i32
    %c0_i32_0 = arith.constant 0 : i32
    %c0_i32_1 = arith.constant 0 : i32
    %c0_i32_2 = arith.constant 0 : i32
    return %c0_i32, %c0_i32_0, %c0_i32_1 : i32, i32, i32
  }
  func.func @transform_13(%arg0: i32, %arg1: i32) -> (i32, i32) {
    %c0_i32 = arith.constant 0 : i32
    %c0_i32_0 = arith.constant 0 : i32
    return %arg0, %c0_i32 : i32, i32
  }
}

</mosaic_0001>

<llo_original>
// kernel: protein_1d_encoder_forward.1
$region0: #{protein_1d_encoder_forward.1}
  #allocation0 [shape = 'u32[]', space=smem, size = 0x4, offset = 0x4, fixed_abs, tag = 'smem constant byte address 0x4 - core index']
  #allocation1 [shape = 'u32[72,128]{1,0:T(1,128)}', space=vmem, size = 0x9000, scoped, tag = 'internal scratch']
  #allocation2 [shape = 'f32[16,32]{1,0:T(8,128)}', space=vmem, size = 0x2000, scoped, tag = 'scratch operand']
  %s0 = inlined_call_operand.vmem [shape: f32[32,32], index: 0, kind: input, shape index: {}]
  %s1 = inlined_call_operand.vmem [shape: f32[2,1,16], index: 1, kind: input, shape index: {}]
  %s2 = inlined_call_operand.vmem [shape: f32[3,16,32], index: 2, kind: input, shape index: {}]
  %s3 = inlined_call_operand.vmem [shape: f32[2,4,32], index: 3, kind: input, shape index: {}]
  %s4 = inlined_call_operand.vmem [shape: bf16[2,32,96], index: 4, kind: input, shape index: {}]
  %s5 = inlined_call_operand.vmem [shape: f32[2,1,96], index: 5, kind: input, shape index: {}]
  %s6 = inlined_call_operand.vmem [shape: bf16[2,32,32], index: 6, kind: input, shape index: {}]
  %s7 = inlined_call_operand.vmem [shape: f32[2,1,32], index: 7, kind: input, shape index: {}]
  %s8 = inlined_call_operand.vmem [shape: bf16[2,32,64], index: 8, kind: input, shape index: {}]
  %s9 = inlined_call_operand.vmem [shape: f32[2,1,64], index: 9, kind: input, shape index: {}]
  %s10 = inlined_call_operand.vmem [shape: bf16[2,64,32], index: 10, kind: input, shape index: {}]
  %s11 = inlined_call_operand.vmem [shape: f32[2,1,32], index: 11, kind: input, shape index: {}]
  %s12 = inlined_call_operand.vmem [shape: f32[2,1,32], index: 12, kind: input, shape index: {}]
  %s13 = inlined_call_operand.vmem [shape: f32[32,32], index: 13, kind: output, shape index: {}]
  %s14 = sld [smem:[#allocation0]]
  $region97: #{protein_1d_encoder_forward.1} parent=0
    _
  %s16 = ssub.s32 1, %s14
  %s17 = scalar_select 0, %s16, %s14
  loop: start=0, step=1, limit=6
  $region2: #{protein_1d_encoder_forward.1} parent=0 // loop_pre_header
    _
  $region3: #{protein_1d_encoder_forward.1} parent=0 // loop_header
    %s19 = sphi 0, %s23
    %p20 = scmp.ge.s32.totalorder %s19, 6
    %s26 = sphi 0, %s38
    %s27 = sphi 0, %s34
    %s28 = sphi 0, %s26
    %s29 = sphi 0, %s27
    %s30 = sphi 0, %s28
    %s31 = sphi 0, %s29
    %s41 = sphi 0, %s43
    %s44 = sphi 0, %s41
    %s45 = sphi 0, %s44
    %s61 = sphi 0, %s45
    %s67 = sphi 0, %s69
    %s70 = sphi 0, %s67
    %s71 = sphi 0, %s70
    %s87 = sphi 0, %s71
    %s91 = sphi 0, %s91
    %s93 = sphi 0, %s91
    %s94 = sphi 0, %s93
    %s108 = sphi 0, %s94
    %s114 = sphi 0, %s116
    %s117 = sphi 0, %s114
    %s118 = sphi 0, %s117
    %s134 = sphi 0, %s118
    %s140 = sphi 0, %s142
    %s143 = sphi 0, %s140
    %s144 = sphi 0, %s143
    %s160 = sphi 0, %s144
    %s166 = sphi 0, %s168
    %s169 = sphi 0, %s166
    %s170 = sphi 0, %s169
    %s186 = sphi 0, %s170
    %s192 = sphi 0, %s194
    %s195 = sphi 0, %s192
    %s196 = sphi 0, %s195
    %s212 = sphi 0, %s196
    %s218 = sphi 0, %s220
    %s221 = sphi 0, %s218
    %s222 = sphi 0, %s221
    %s238 = sphi 0, %s222
    %s244 = sphi 0, %s246
    %s247 = sphi 0, %s244
    %s248 = sphi 0, %s247
    %s264 = sphi 0, %s248
    %s270 = sphi 0, %s272
    %s273 = sphi 0, %s270
    %s274 = sphi 0, %s273
    %s290 = sphi 0, %s274
    %s296 = sphi 0, %s298
    %s299 = sphi 0, %s296
    %s300 = sphi 0, %s299
    %s316 = sphi 0, %s300
    %s322 = sphi 0, %s324
    %s325 = sphi 0, %s322
    %s326 = sphi 0, %s325
    %s342 = sphi 0, %s326
    %s346 = sphi 0, %s346
    %s348 = sphi 0, %s346
    %s349 = sphi 0, %s348
    %s363 = sphi 0, %s349
    %s369 = sphi 0, %s371
    %s372 = sphi 0, %s369
    %s373 = sphi 0, %s372
    %s389 = sphi 0, %s373
  $region4: #{protein_1d_encoder_forward.1} parent=0 // loop_header_branch
    %22 = sbr.rel (%p20) target = $region8
  $region5: #{protein_1d_encoder_forward.1} parent=0 // loop_body
    %s24 = ssub.s32 %s19, 1
    %s25 = ssub.s32 %s19, 2
    %s32 = sadd.s32 1, %s27
    %p33 = scmp.ge.s32.totalorder %s32, 2
    %s34 = scalar_select %p33, 0, %s32
    %s35 = sadd.s32 1, %s26
    %s36 = scalar_select %p33, %s35, %s26
    %p37 = scmp.ge.s32.totalorder %s36, 2
    %s38 = scalar_select %p37, 0, %s36
    %s39 = ssub.s32 %s26, %s38
    %p40 = scmp.eq.s32.totalorder %s39, 0
    %s42 = sadd.s32 %s41, 1
    %s43 = scalar_select %p40, %s41, %s42
    %p46 = pneg %p40
    %p47 = scmp.eq.s32.totalorder %s19, 3
    %p48 = por %p46, %p47
    %p49 = scmp.ne.s32.totalorder %s41, %s44
    %p50 = scmp.eq.s32.totalorder %s19, 0
    %p51 = por %p49, %p50
    %p52 = scmp.ne.s32.totalorder %s41, %s44
    %p53 = scmp.eq.s32.totalorder %s24, 3
    %p54 = por %p52, %p53
    %p55 = scmp.ne.s32.totalorder %s44, %s45
    %p56 = scmp.eq.s32.totalorder %s24, 0
    %p57 = por %p55, %p56
    %p58 = scmp.ne.s32.totalorder %s44, %s45
    %p59 = scmp.eq.s32.totalorder %s25, 3
    %p60 = por %p58, %p59
    %p62 = scmp.ne.s32.totalorder %s45, %s61
    %p63 = scmp.eq.s32.totalorder %s25, 0
    %p64 = por %p62, %p63
    %s65 = ssub.s32 %s26, %s38
    %p66 = scmp.eq.s32.totalorder %s65, 0
    %s68 = sadd.s32 %s67, 1
    %s69 = scalar_select %p66, %s67, %s68
    %p72 = pneg %p66
    %p73 = scmp.eq.s32.totalorder %s19, 3
    %p74 = por %p72, %p73
    %p75 = scmp.ne.s32.totalorder %s67, %s70
    %p76 = scmp.eq.s32.totalorder %s19, 0
    %p77 = por %p75, %p76
    %p78 = scmp.ne.s32.totalorder %s67, %s70
    %p79 = scmp.eq.s32.totalorder %s24, 3
    %p80 = por %p78, %p79
    %p81 = scmp.ne.s32.totalorder %s70, %s71
    %p82 = scmp.eq.s32.totalorder %s24, 0
    %p83 = por %p81, %p82
    %p84 = scmp.ne.s32.totalorder %s70, %s71
    %p85 = scmp.eq.s32.totalorder %s25, 3
    %p86 = por %p84, %p85
    %p88 = scmp.ne.s32.totalorder %s71, %s87
    %p89 = scmp.eq.s32.totalorder %s25, 0
    %p90 = por %p88, %p89
    %s92 = sadd.s32 %s91, 1
    %p95 = scmp.eq.s32.totalorder %s19, 3
    %p96 = scmp.ne.s32.totalorder %s91, %s93
    %p97 = scmp.eq.s32.totalorder %s19, 0
    %p98 = por %p96, %p97
    %p99 = scmp.ne.s32.totalorder %s91, %s93
    %p100 = scmp.eq.s32.totalorder %s24, 3
    %p101 = por %p99, %p100
    %p102 = scmp.ne.s32.totalorder %s93, %s94
    %p103 = scmp.eq.s32.totalorder %s24, 0
    %p104 = por %p102, %p103
    %p105 = scmp.ne.s32.totalorder %s93, %s94
    %p106 = scmp.eq.s32.totalorder %s25, 3
    %p107 = por %p105, %p106
    %p109 = scmp.ne.s32.totalorder %s94, %s108
    %p110 = scmp.eq.s32.totalorder %s25, 0
    %p111 = por %p109, %p110
    %s112 = ssub.s32 %s27, %s34
    %p113 = scmp.eq.s32.totalorder %s112, 0
    %s115 = sadd.s32 %s114, 1
    %s116 = scalar_select %p113, %s114, %s115
    %p119 = pneg %p113
    %p120 = scmp.eq.s32.totalorder %s19, 3
    %p121 = por %p119, %p120
    %p122 = scmp.ne.s32.totalorder %s114, %s117
    %p123 = scmp.eq.s32.totalorder %s19, 0
    %p124 = por %p122, %p123
    %p125 = scmp.ne.s32.totalorder %s114, %s117
    %p126 = scmp.eq.s32.totalorder %s24, 3
    %p127 = por %p125, %p126
    %p128 = scmp.ne.s32.totalorder %s117, %s118
    %p129 = scmp.eq.s32.totalorder %s24, 0
    %p130 = por %p128, %p129
    %p131 = scmp.ne.s32.totalorder %s117, %s118
    %p132 = scmp.eq.s32.totalorder %s25, 3
    %p133 = por %p131, %p132
    %p135 = scmp.ne.s32.totalorder %s118, %s134
    %p136 = scmp.eq.s32.totalorder %s25, 0
    %p137 = por %p135, %p136
    %s138 = ssub.s32 %s27, %s34
    %p139 = scmp.eq.s32.totalorder %s138, 0
    %s141 = sadd.s32 %s140, 1
    %s142 = scalar_select %p139, %s140, %s141
    %p145 = pneg %p139
    %p146 = scmp.eq.s32.totalorder %s19, 3
    %p147 = por %p145, %p146
    %p148 = scmp.ne.s32.totalorder %s140, %s143
    %p149 = scmp.eq.s32.totalorder %s19, 0
    %p150 = por %p148, %p149
    %p151 = scmp.ne.s32.totalorder %s140, %s143
    %p152 = scmp.eq.s32.totalorder %s24, 3
    %p153 = por %p151, %p152
    %p154 = scmp.ne.s32.totalorder %s143, %s144
    %p155 = scmp.eq.s32.totalorder %s24, 0
    %p156 = por %p154, %p155
    %p157 = scmp.ne.s32.totalorder %s143, %s144
    %p158 = scmp.eq.s32.totalorder %s25, 3
    %p159 = por %p157, %p158
    %p161 = scmp.ne.s32.totalorder %s144, %s160
    %p162 = scmp.eq.s32.totalorder %s25, 0
    %p163 = por %p161, %p162
    %s164 = ssub.s32 %s27, %s34
    %p165 = scmp.eq.s32.totalorder %s164, 0
    %s167 = sadd.s32 %s166, 1
    %s168 = scalar_select %p165, %s166, %s167
    %p171 = pneg %p165
    %p172 = scmp.eq.s32.totalorder %s19, 3
    %p173 = por %p171, %p172
    %p174 = scmp.ne.s32.totalorder %s166, %s169
    %p175 = scmp.eq.s32.totalorder %s19, 0
    %p176 = por %p174, %p175
    %p177 = scmp.ne.s32.totalorder %s166, %s169
    %p178 = scmp.eq.s32.totalorder %s24, 3
    %p179 = por %p177, %p178
    %p180 = scmp.ne.s32.totalorder %s169, %s170
    %p181 = scmp.eq.s32.totalorder %s24, 0
    %p182 = por %p180, %p181
    %p183 = scmp.ne.s32.totalorder %s169, %s170
    %p184 = scmp.eq.s32.totalorder %s25, 3
    %p185 = por %p183, %p184
    %p187 = scmp.ne.s32.totalorder %s170, %s186
    %p188 = scmp.eq.s32.totalorder %s25, 0
    %p189 = por %p187, %p188
    %s190 = ssub.s32 %s27, %s34
    %p191 = scmp.eq.s32.totalorder %s190, 0
    %s193 = sadd.s32 %s192, 1
    %s194 = scalar_select %p191, %s192, %s193
    %p197 = pneg %p191
    %p198 = scmp.eq.s32.totalorder %s19, 3
    %p199 = por %p197, %p198
    %p200 = scmp.ne.s32.totalorder %s192, %s195
    %p201 = scmp.eq.s32.totalorder %s19, 0
    %p202 = por %p200, %p201
    %p203 = scmp.ne.s32.totalorder %s192, %s195
    %p204 = scmp.eq.s32.totalorder %s24, 3
    %p205 = por %p203, %p204
    %p206 = scmp.ne.s32.totalorder %s195, %s196
    %p207 = scmp.eq.s32.totalorder %s24, 0
    %p208 = por %p206, %p207
    %p209 = scmp.ne.s32.totalorder %s195, %s196
    %p210 = scmp.eq.s32.totalorder %s25, 3
    %p211 = por %p209, %p210
    %p213 = scmp.ne.s32.totalorder %s196, %s212
    %p214 = scmp.eq.s32.totalorder %s25, 0
    %p215 = por %p213, %p214
    %s216 = ssub.s32 %s27, %s34
    %p217 = scmp.eq.s32.totalorder %s216, 0
    %s219 = sadd.s32 %s218, 1
    %s220 = scalar_select %p217, %s218, %s219
    %p223 = pneg %p217
    %p224 = scmp.eq.s32.totalorder %s19, 3
    %p225 = por %p223, %p224
    %p226 = scmp.ne.s32.totalorder %s218, %s221
    %p227 = scmp.eq.s32.totalorder %s19, 0
    %p228 = por %p226, %p227
    %p229 = scmp.ne.s32.totalorder %s218, %s221
    %p230 = scmp.eq.s32.totalorder %s24, 3
    %p231 = por %p229, %p230
    %p232 = scmp.ne.s32.totalorder %s221, %s222
    %p233 = scmp.eq.s32.totalorder %s24, 0
    %p234 = por %p232, %p233
    %p235 = scmp.ne.s32.totalorder %s221, %s222
    %p236 = scmp.eq.s32.totalorder %s25, 3
    %p237 = por %p235, %p236
    %p239 = scmp.ne.s32.totalorder %s222, %s238
    %p240 = scmp.eq.s32.totalorder %s25, 0
    %p241 = por %p239, %p240
    %s242 = ssub.s32 %s27, %s34
    %p243 = scmp.eq.s32.totalorder %s242, 0
    %s245 = sadd.s32 %s244, 1
    %s246 = scalar_select %p243, %s244, %s245
    %p249 = pneg %p243
    %p250 = scmp.eq.s32.totalorder %s19, 3
    %p251 = por %p249, %p250
    %p252 = scmp.ne.s32.totalorder %s244, %s247
    %p253 = scmp.eq.s32.totalorder %s19, 0
    %p254 = por %p252, %p253
    %p255 = scmp.ne.s32.totalorder %s244, %s247
    %p256 = scmp.eq.s32.totalorder %s24, 3
    %p257 = por %p255, %p256
    %p258 = scmp.ne.s32.totalorder %s247, %s248
    %p259 = scmp.eq.s32.totalorder %s24, 0
    %p260 = por %p258, %p259
    %p261 = scmp.ne.s32.totalorder %s247, %s248
    %p262 = scmp.eq.s32.totalorder %s25, 3
    %p263 = por %p261, %p262
    %p265 = scmp.ne.s32.totalorder %s248, %s264
    %p266 = scmp.eq.s32.totalorder %s25, 0
    %p267 = por %p265, %p266
    %s268 = ssub.s32 %s27, %s34
    %p269 = scmp.eq.s32.totalorder %s268, 0
    %s271 = sadd.s32 %s270, 1
    %s272 = scalar_select %p269, %s270, %s271
    %p275 = pneg %p269
    %p276 = scmp.eq.s32.totalorder %s19, 3
    %p277 = por %p275, %p276
    %p278 = scmp.ne.s32.totalorder %s270, %s273
    %p279 = scmp.eq.s32.totalorder %s19, 0
    %p280 = por %p278, %p279
    %p281 = scmp.ne.s32.totalorder %s270, %s273
    %p282 = scmp.eq.s32.totalorder %s24, 3
    %p283 = por %p281, %p282
    %p284 = scmp.ne.s32.totalorder %s273, %s274
    %p285 = scmp.eq.s32.totalorder %s24, 0
    %p286 = por %p284, %p285
    %p287 = scmp.ne.s32.totalorder %s273, %s274
    %p288 = scmp.eq.s32.totalorder %s25, 3
    %p289 = por %p287, %p288
    %p291 = scmp.ne.s32.totalorder %s274, %s290
    %p292 = scmp.eq.s32.totalorder %s25, 0
    %p293 = por %p291, %p292
    %s294 = ssub.s32 %s27, %s34
    %p295 = scmp.eq.s32.totalorder %s294, 0
    %s297 = sadd.s32 %s296, 1
    %s298 = scalar_select %p295, %s296, %s297
    %p301 = pneg %p295
    %p302 = scmp.eq.s32.totalorder %s19, 3
    %p303 = por %p301, %p302
    %p304 = scmp.ne.s32.totalorder %s296, %s299
    %p305 = scmp.eq.s32.totalorder %s19, 0
    %p306 = por %p304, %p305
    %p307 = scmp.ne.s32.totalorder %s296, %s299
    %p308 = scmp.eq.s32.totalorder %s24, 3
    %p309 = por %p307, %p308
    %p310 = scmp.ne.s32.totalorder %s299, %s300
    %p311 = scmp.eq.s32.totalorder %s24, 0
    %p312 = por %p310, %p311
    %p313 = scmp.ne.s32.totalorder %s299, %s300
    %p314 = scmp.eq.s32.totalorder %s25, 3
    %p315 = por %p313, %p314
    %p317 = scmp.ne.s32.totalorder %s300, %s316
    %p318 = scmp.eq.s32.totalorder %s25, 0
    %p319 = por %p317, %p318
    %s320 = ssub.s32 %s27, %s34
    %p321 = scmp.eq.s32.totalorder %s320, 0
    %s323 = sadd.s32 %s322, 1
    %s324 = scalar_select %p321, %s322, %s323
    %p327 = pneg %p321
    %p328 = scmp.eq.s32.totalorder %s19, 3
    %p329 = por %p327, %p328
    %p330 = scmp.ne.s32.totalorder %s322, %s325
    %p331 = scmp.eq.s32.totalorder %s19, 0
    %p332 = por %p330, %p331
    %p333 = scmp.ne.s32.totalorder %s322, %s325
    %p334 = scmp.eq.s32.totalorder %s24, 3
    %p335 = por %p333, %p334
    %p336 = scmp.ne.s32.totalorder %s325, %s326
    %p337 = scmp.eq.s32.totalorder %s24, 0
    %p338 = por %p336, %p337
    %p339 = scmp.ne.s32.totalorder %s325, %s326
    %p340 = scmp.eq.s32.totalorder %s25, 3
    %p341 = por %p339, %p340
    %p343 = scmp.ne.s32.totalorder %s326, %s342
    %p344 = scmp.eq.s32.totalorder %s25, 0
    %p345 = por %p343, %p344
    %s347 = sadd.s32 %s346, 1
    %p350 = scmp.eq.s32.totalorder %s19, 3
    %p351 = scmp.ne.s32.totalorder %s346, %s348
    %p352 = scmp.eq.s32.totalorder %s19, 0
    %p353 = por %p351, %p352
    %p354 = scmp.ne.s32.totalorder %s346, %s348
    %p355 = scmp.eq.s32.totalorder %s24, 3
    %p356 = por %p354, %p355
    %p357 = scmp.ne.s32.totalorder %s348, %s349
    %p358 = scmp.eq.s32.totalorder %s24, 0
    %p359 = por %p357, %p358
    %p360 = scmp.ne.s32.totalorder %s348, %s349
    %p361 = scmp.eq.s32.totalorder %s25, 3
    %p362 = por %p360, %p361
    %p364 = scmp.ne.s32.totalorder %s349, %s363
    %p365 = scmp.eq.s32.totalorder %s25, 0
    %p366 = por %p364, %p365
    %s367 = ssub.s32 %s26, %s38
    %p368 = scmp.eq.s32.totalorder %s367, 0
    %s370 = sadd.s32 %s369, 1
    %s371 = scalar_select %p368, %s369, %s370
    %p374 = pneg %p368
    %p375 = scmp.eq.s32.totalorder %s19, 3
    %p376 = por %p374, %p375
    %p377 = scmp.ne.s32.totalorder %s369, %s372
    %p378 = scmp.eq.s32.totalorder %s19, 0
    %p379 = por %p377, %p378
    %p380 = scmp.ne.s32.totalorder %s369, %s372
    %p381 = scmp.eq.s32.totalorder %s24, 3
    %p382 = por %p380, %p381
    %p383 = scmp.ne.s32.totalorder %s372, %s373
    %p384 = scmp.eq.s32.totalorder %s24, 0
    %p385 = por %p383, %p384
    %p386 = scmp.ne.s32.totalorder %s372, %s373
    %p387 = scmp.eq.s32.totalorder %s25, 3
    %p388 = por %p386, %p387
    %p390 = scmp.ne.s32.totalorder %s373, %s389
    %p391 = scmp.eq.s32.totalorder %s25, 0
    %p392 = por %p390, %p391
    %p393 = scmp.le.s32.totalorder 1, %s19
    %p394 = scmp.lt.s32.totalorder %s19, 5
    %p395 = pnand %p393, %p394
    %p396 = pneg %p395
    // Predicated region
    $region9: #{protein_1d_encoder_forward.1} parent=5 // pred_check
      _
    $region10: #{protein_1d_encoder_forward.1} parent=5 // pred_check_branch
      %398 = sbr.rel (%p395) target = $region12
    $region11: #{protein_1d_encoder_forward.1} parent=5 // pred_region
      %s399 = ssub.s32 %s19, 1
      // Predicated region
      $region13: #{protein_1d_encoder_forward.1} parent=11 // pred_check
        %p400 = pneg %p104
      $region14: #{protein_1d_encoder_forward.1} parent=11 // pred_check_branch
        %402 = sbr.rel (%p400) target = $region16
      $region15: #{protein_1d_encoder_forward.1} parent=11 // pred_region
        _
      $region16: #{protein_1d_encoder_forward.1} parent=11 // pred_fallthru
        _
      // Predicated region
      $region17: #{protein_1d_encoder_forward.1} parent=11 // pred_check
        %p403 = pneg %p359
      $region18: #{protein_1d_encoder_forward.1} parent=11 // pred_check_branch
        %405 = sbr.rel (%p403) target = $region20
      $region19: #{protein_1d_encoder_forward.1} parent=11 // pred_region
        _
      $region20: #{protein_1d_encoder_forward.1} parent=11 // pred_fallthru
        _
    $region12: #{protein_1d_encoder_forward.1} parent=5 // pred_fallthru
      _
    %p406 = scmp.lt.s32.totalorder %s19, 4
    // Predicated region
    $region21: #{protein_1d_encoder_forward.1} parent=5 // pred_check
      %p407 = pneg %p406
    $region22: #{protein_1d_encoder_forward.1} parent=5 // pred_check_branch
      %409 = sbr.rel (%p407) target = $region24
    $region23: #{protein_1d_encoder_forward.1} parent=5 // pred_region
      // Predicated region
      $region25: #{protein_1d_encoder_forward.1} parent=23 // pred_check
        %p410 = pneg %p51
      $region26: #{protein_1d_encoder_forward.1} parent=23 // pred_check_branch
        %412 = sbr.rel (%p410) target = $region28
      $region27: #{protein_1d_encoder_forward.1} parent=23 // pred_region
        %s413 = smul.u32 2, %s26
        %p414 = scmp.lt.s32.totalorder %s413, 3
        %s415 = scalar_select %p414, %s413, 3
        %s416 = smul.addr %s415, 8
        %s417 = scalar_lea.vmem %s0, %s416
        %s418 = smul.u32 2, %s26
      $region28: #{protein_1d_encoder_forward.1} parent=23 // pred_fallthru
        _
      // Predicated region
      $region29: #{protein_1d_encoder_forward.1} parent=23 // pred_check
        %p419 = pneg %p77
      $region30: #{protein_1d_encoder_forward.1} parent=23 // pred_check_branch
        %421 = sbr.rel (%p419) target = $region32
      $region31: #{protein_1d_encoder_forward.1} parent=23 // pred_region
        %p422 = scmp.lt.s32.totalorder %s26, 1
        %s423 = scalar_select %p422, %s26, 1
        %s424 = scalar_lea.vmem %s1, %s423
      $region32: #{protein_1d_encoder_forward.1} parent=23 // pred_fallthru
        _
      // Predicated region
      $region33: #{protein_1d_encoder_forward.1} parent=23 // pred_check
        %p425 = pneg %p124
      $region34: #{protein_1d_encoder_forward.1} parent=23 // pred_check_branch
        %427 = sbr.rel (%p425) target = $region36
      $region35: #{protein_1d_encoder_forward.1} parent=23 // pred_region
        %p428 = scmp.lt.s32.totalorder %s27, 1
        %s429 = scalar_select %p428, %s27, 1
        %s430 = smul.addr %s429, 4
        %s431 = scalar_lea.vmem %s3, %s430
      $region36: #{protein_1d_encoder_forward.1} parent=23 // pred_fallthru
        _
      // Predicated region
      $region37: #{protein_1d_encoder_forward.1} parent=23 // pred_check
        %p432 = pneg %p150
      $region38: #{protein_1d_encoder_forward.1} parent=23 // pred_check_branch
        %434 = sbr.rel (%p432) target = $region40
      $region39: #{protein_1d_encoder_forward.1} parent=23 // pred_region
        %p435 = scmp.lt.s32.totalorder %s27, 1
        %s436 = scalar_select %p435, %s27, 1
        %s437 = smul.addr %s436, 4
        %s438 = smul.addr %s437, 4
        %s439 = scalar_lea.vmem %s4, %s438
      $region40: #{protein_1d_encoder_forward.1} parent=23 // pred_fallthru
        _
      // Predicated region
      $region41: #{protein_1d_encoder_forward.1} parent=23 // pred_check
        %p440 = pneg %p176
      $region42: #{protein_1d_encoder_forward.1} parent=23 // pred_check_branch
        %442 = sbr.rel (%p440) target = $region44
      $region43: #{protein_1d_encoder_forward.1} parent=23 // pred_region
        %p443 = scmp.lt.s32.totalorder %s27, 1
        %s444 = scalar_select %p443, %s27, 1
        %s445 = scalar_lea.vmem %s5, %s444
      $region44: #{protein_1d_encoder_forward.1} parent=23 // pred_fallthru
        _
      // Predicated region
      $region45: #{protein_1d_encoder_forward.1} parent=23 // pred_check
        %p446 = pneg %p202
      $region46: #{protein_1d_encoder_forward.1} parent=23 // pred_check_branch
        %448 = sbr.rel (%p446) target = $region48
      $region47: #{protein_1d_encoder_forward.1} parent=23 // pred_region
        %p449 = scmp.lt.s32.totalorder %s27, 1
        %s450 = scalar_select %p449, %s27, 1
        %s451 = smul.addr %s450, 4
        %s452 = smul.addr %s451, 4
        %s453 = scalar_lea.vmem %s6, %s452
      $region48: #{protein_1d_encoder_forward.1} parent=23 // pred_fallthru
        _
      // Predicated region
      $region49: #{protein_1d_encoder_forward.1} parent=23 // pred_check
        %p454 = pneg %p228
      $region50: #{protein_1d_encoder_forward.1} parent=23 // pred_check_branch
        %456 = sbr.rel (%p454) target = $region52
      $region51: #{protein_1d_encoder_forward.1} parent=23 // pred_region
        %p457 = scmp.lt.s32.totalorder %s27, 1
        %s458 = scalar_select %p457, %s27, 1
        %s459 = scalar_lea.vmem %s7, %s458
      $region52: #{protein_1d_encoder_forward.1} parent=23 // pred_fallthru
        _
      // Predicated region
      $region53: #{protein_1d_encoder_forward.1} parent=23 // pred_check
        %p460 = pneg %p254
      $region54: #{protein_1d_encoder_forward.1} parent=23 // pred_check_branch
        %462 = sbr.rel (%p460) target = $region56
      $region55: #{protein_1d_encoder_forward.1} parent=23 // pred_region
        %p463 = scmp.lt.s32.totalorder %s27, 1
        %s464 = scalar_select %p463, %s27, 1
        %s465 = smul.addr %s464, 4
        %s466 = smul.addr %s465, 4
        %s467 = scalar_lea.vmem %s8, %s466
      $region56: #{protein_1d_encoder_forward.1} parent=23 // pred_fallthru
        _
      // Predicated region
      $region57: #{protein_1d_encoder_forward.1} parent=23 // pred_check
        %p468 = pneg %p280
      $region58: #{protein_1d_encoder_forward.1} parent=23 // pred_check_branch
        %470 = sbr.rel (%p468) target = $region60
      $region59: #{protein_1d_encoder_forward.1} parent=23 // pred_region
        %p471 = scmp.lt.s32.totalorder %s27, 1
        %s472 = scalar_select %p471, %s27, 1
        %s473 = scalar_lea.vmem %s9, %s472
      $region60: #{protein_1d_encoder_forward.1} parent=23 // pred_fallthru
        _
      // Predicated region
      $region61: #{protein_1d_encoder_forward.1} parent=23 // pred_check
        %p474 = pneg %p306
      $region62: #{protein_1d_encoder_forward.1} parent=23 // pred_check_branch
        %476 = sbr.rel (%p474) target = $region64
      $region63: #{protein_1d_encoder_forward.1} parent=23 // pred_region
        %p477 = scmp.lt.s32.totalorder %s27, 1
        %s478 = scalar_select %p477, %s27, 1
        %s479 = smul.addr %s478, 8
        %s480 = smul.addr %s479, 4
        %s481 = scalar_lea.vmem %s10, %s480
      $region64: #{protein_1d_encoder_forward.1} parent=23 // pred_fallthru
        _
      // Predicated region
      $region65: #{protein_1d_encoder_forward.1} parent=23 // pred_check
        %p482 = pneg %p332
      $region66: #{protein_1d_encoder_forward.1} parent=23 // pred_check_branch
        %484 = sbr.rel (%p482) target = $region68
      $region67: #{protein_1d_encoder_forward.1} parent=23 // pred_region
        %p485 = scmp.lt.s32.totalorder %s27, 1
        %s486 = scalar_select %p485, %s27, 1
        %s487 = scalar_lea.vmem %s11, %s486
      $region68: #{protein_1d_encoder_forward.1} parent=23 // pred_fallthru
        _
    $region24: #{protein_1d_encoder_forward.1} parent=5 // pred_fallthru
      _
    %p488 = scmp.le.s32.totalorder 1, %s19
    %p489 = scmp.lt.s32.totalorder %s19, 5
    %p490 = pnand %p488, %p489
    %p491 = pneg %p490
    // Predicated region
    $region69: #{protein_1d_encoder_forward.1} parent=5 // pred_check
      _
    $region70: #{protein_1d_encoder_forward.1} parent=5 // pred_check_branch
      %493 = sbr.rel (%p490) target = $region72
    $region71: #{protein_1d_encoder_forward.1} parent=5 // pred_region
      %s494 = ssub.s32 %s19, 1
      %s495 = smul.u32 2, %s28
      %p496 = scmp.lt.s32.totalorder %s495, 3
      %s497 = scalar_select %p496, %s495, 3
      %s498 = smul.addr %s497, 8
      %s499 = scalar_lea.vmem %s0, %s498
      %p500 = pneg %p57
      %p501 = pneg %p54
      %p502 = scmp.lt.s32.totalorder %s28, 1
      %s503 = scalar_select %p502, %s28, 1
      %s504 = scalar_lea.vmem %s1, %s503
      %p505 = pneg %p83
      %p506 = pneg %p80
      %p507 = pneg %p104
      %p508 = pneg %p101
      %p509 = scmp.lt.s32.totalorder %s29, 1
      %s510 = scalar_select %p509, %s29, 1
      %s511 = smul.addr %s510, 4
      %s512 = scalar_lea.vmem %s3, %s511
      %p513 = pneg %p130
      %p514 = pneg %p127
      %p515 = scmp.lt.s32.totalorder %s29, 1
      %s516 = scalar_select %p515, %s29, 1
      %s517 = smul.addr %s516, 4
      %s518 = smul.addr %s517, 4
      %s519 = scalar_lea.vmem %s4, %s518
      %p520 = pneg %p156
      %p521 = pneg %p153
      %p522 = scmp.lt.s32.totalorder %s29, 1
      %s523 = scalar_select %p522, %s29, 1
      %s524 = scalar_lea.vmem %s5, %s523
      %p525 = pneg %p182
      %p526 = pneg %p179
      %p527 = scmp.lt.s32.totalorder %s29, 1
      %s528 = scalar_select %p527, %s29, 1
      %s529 = smul.addr %s528, 4
      %s530 = smul.addr %s529, 4
      %s531 = scalar_lea.vmem %s6, %s530
      %p532 = pneg %p208
      %p533 = pneg %p205
      %p534 = scmp.lt.s32.totalorder %s29, 1
      %s535 = scalar_select %p534, %s29, 1
      %s536 = scalar_lea.vmem %s7, %s535
      %p537 = pneg %p234
      %p538 = pneg %p231
      %p539 = scmp.lt.s32.totalorder %s29, 1
      %s540 = scalar_select %p539, %s29, 1
      %s541 = smul.addr %s540, 4
      %s542 = smul.addr %s541, 4
      %s543 = scalar_lea.vmem %s8, %s542
      %p544 = pneg %p260
      %p545 = pneg %p257
      %p546 = scmp.lt.s32.totalorder %s29, 1
      %s547 = scalar_select %p546, %s29, 1
      %s548 = scalar_lea.vmem %s9, %s547
      %p549 = pneg %p286
      %p550 = pneg %p283
      %p551 = scmp.lt.s32.totalorder %s29, 1
      %s552 = scalar_select %p551, %s29, 1
      %s553 = smul.addr %s552, 8
      %s554 = smul.addr %s553, 4
      %s555 = scalar_lea.vmem %s10, %s554
      %p556 = pneg %p312
      %p557 = pneg %p309
      %p558 = scmp.lt.s32.totalorder %s29, 1
      %s559 = scalar_select %p558, %s29, 1
      %s560 = scalar_lea.vmem %s11, %s559
      %p561 = pneg %p338
      %p562 = pneg %p335
      %p563 = pneg %p359
      %p564 = pneg %p356
      %p565 = pneg %p385
      %p566 = pneg %p382
      %s567 = smul.u32 2, %s28
      %p568 = scmp.lt.s32.totalorder %s567, 3
      %s569 = scalar_select %p568, %s567, 3
      %s570 = smul.addr %s569, 8
      %s571 = scalar_lea.vmem %s13, %s570
      %s572 = smul.u32 2, %s28
      %p573 = scmp.lt.s32.totalorder %s572, 3
      %s574 = scalar_select %p573, %s572, 3
      %s575 = smul.addr %s574, 8
      %s576 = scalar_lea.vmem %s0, %s575
      %s577 = smul.u32 2, %s28
      %p578 = scmp.lt.s32.totalorder %s28, 1
      %s579 = scalar_select %p578, %s28, 1
      %s580 = scalar_lea.vmem %s1, %s579
      %p581 = scmp.lt.s32.totalorder %s29, 1
      %s582 = scalar_select %p581, %s29, 1
      %s583 = smul.addr %s582, 4
      %s584 = scalar_lea.vmem %s3, %s583
      %p585 = scmp.lt.s32.totalorder %s29, 1
      %s586 = scalar_select %p585, %s29, 1
      %s587 = smul.addr %s586, 4
      %s588 = smul.addr %s587, 4
      %s589 = scalar_lea.vmem %s4, %s588
      %p590 = scmp.lt.s32.totalorder %s29, 1
      %s591 = scalar_select %p590, %s29, 1
      %s592 = scalar_lea.vmem %s5, %s591
      %p593 = scmp.lt.s32.totalorder %s29, 1
      %s594 = scalar_select %p593, %s29, 1
      %s595 = smul.addr %s594, 4
      %s596 = smul.addr %s595, 4
      %s597 = scalar_lea.vmem %s6, %s596
      %p598 = scmp.lt.s32.totalorder %s29, 1
      %s599 = scalar_select %p598, %s29, 1
      %s600 = scalar_lea.vmem %s7, %s599
      %p601 = scmp.lt.s32.totalorder %s29, 1
      %s602 = scalar_select %p601, %s29, 1
      %s603 = smul.addr %s602, 4
      %s604 = smul.addr %s603, 4
      %s605 = scalar_lea.vmem %s8, %s604
      %p606 = scmp.lt.s32.totalorder %s29, 1
      %s607 = scalar_select %p606, %s29, 1
      %s608 = scalar_lea.vmem %s9, %s607
      %p609 = scmp.lt.s32.totalorder %s29, 1
      %s610 = scalar_select %p609, %s29, 1
      %s611 = smul.addr %s610, 8
      %s612 = smul.addr %s611, 4
      %s613 = scalar_lea.vmem %s10, %s612
      %p614 = scmp.lt.s32.totalorder %s29, 1
      %s615 = scalar_select %p614, %s29, 1
      %s616 = scalar_lea.vmem %s11, %s615
      %s617 = smul.u32 2, %s28
      %p618 = scmp.lt.s32.totalorder %s617, 3
      %s619 = scalar_select %p618, %s617, 3
      %s620 = smul.addr %s619, 8
      %s621 = scalar_lea.vmem %s13, %s620
      %s622 = smul.u32 2, %s28
      %p624 = scmp.eq.s32.totalorder %s29, 0
      // Predicated region
      $region73: #{protein_1d_encoder_forward.1} parent=71 // pred_check
        %p625 = pneg %p624
      $region74: #{protein_1d_encoder_forward.1} parent=71 // pred_check_branch
        %627 = sbr.rel (%p625) target = $region76
      $region75: #{protein_1d_encoder_forward.1} parent=71 // pred_region
        %v628 = vld [vmem:[%s576] sm:$0xff]
        %v629 = vld [vmem:[%s576 + $0x8] sm:$0xff]
        %vm630 = vcmask 261120
        %631 = vst.msk [vmem:[%s621] sm:$0xff] %vm630, %v628
        %632 = vst.msk [vmem:[%s621 + $0x8] sm:$0xff] %vm630, %v629
      $region76: #{protein_1d_encoder_forward.1} parent=71 // pred_fallthru
        _
      %v633 = vld [vmem:[%s621] sm:$0xff]
      %v634 = vld [vmem:[%s621 + $0x8] sm:$0xff]
      %v635 = vld [vmem:[%s2] sm:$0xff]
      %v636 = vld [vmem:[%s2 + $0x8] sm:$0xff]
      %s637 = scalar_lea.vmem %s2, 16
      %v638 = vld [vmem:[%s637] sm:$0xff]
      %v639 = vld [vmem:[%s637 + $0x8] sm:$0xff]
      %s640 = scalar_lea.vmem %s2, 32
      %v641 = vld [vmem:[%s640] sm:$0xff]
      %v642 = vld [vmem:[%s640 + $0x8] sm:$0xff]
      %v643 = vld [vmem:[%s584] sm:$0xf]
      %v644 = vld [vmem:[%s580] sm:$0x1]
      %vm645 = vcmask 261120
      %v646 = vsel %vm645, %v633, 0.0
      %647 = vadd.xlane.f32.xlu0 %v646
      %v648 = vpop.xlane.xlu0 %647
      %v649 = vsel %vm645, %v634, 0.0
      %650 = vadd.xlane.f32.xlu0 %v649
      %v651 = vpop.xlane.xlu0 %650
      %v652 = vrcp.pop 32.0
      %v653 = vmul.f32 32.0, %v652
      %v654 = vsub.f32 1.0, %v653
      %v655 = vmul.f32 %v652, %v654
      %v656 = vadd.f32 %v652, %v655
      %vm657 = vweird.f32 %v652
      %v658 = vsel %vm657, %v652, %v656
      %v659 = vmul.f32 %v648, %v658
      %v660 = vmul.f32 %v651, %v658
      %v661 = vsub.f32 %v633, %v659
      %v662 = vsub.f32 %v634, %v660
      %v663 = vmul.f32 %v661, %v661
      %v664 = vmul.f32 %v662, %v662
      %v665 = vsel %vm645, %v663, 0.0
      %666 = vadd.xlane.f32.xlu0 %v665
      %v667 = vpop.xlane.xlu0 %666
      %v668 = vsel %vm645, %v664, 0.0
      %669 = vadd.xlane.f32.xlu0 %v668
      %v670 = vpop.xlane.xlu0 %669
      %v671 = vmul.f32 %v667, %v658
      %v672 = vmul.f32 %v670, %v658
      %v673 = vadd.f32 %v671, 1e-05
      %v674 = vadd.f32 %v672, 1e-05
      %v675 = vrsqrt.pop %v673
      %v676 = vmul.f32 %v675, %v673
      %v677 = vmul.f32 %v676, %v675
      %v678 = vmul.f32 0.5, %v677
      %v679 = vsub.f32 1.5, %v678
      %v680 = vmul.f32 %v675, %v679
      %vm681 = vweird.f32 %v673
      %vm682 = vweird.f32 %v675
      %vm683 = vmor %vm681, %vm682
      %v684 = vsel %vm683, %v675, %v680
      %v685 = vrsqrt.pop %v674
      %v686 = vmul.f32 %v685, %v674
      %v687 = vmul.f32 %v686, %v685
      %v688 = vmul.f32 0.5, %v687
      %v689 = vsub.f32 1.5, %v688
      %v690 = vmul.f32 %v685, %v689
      %vm691 = vweird.f32 %v674
      %vm692 = vweird.f32 %v685
      %vm693 = vmor %vm691, %vm692
      %v694 = vsel %vm693, %v685, %v690
      %v695 = vmul.f32 %v661, %v684
      %v696 = vmul.f32 %v662, %v694
      %v697 = vperm.slane %v643, 0
      %v698 = vmul.f32 %v695, %v697
      %v699 = vmul.f32 %v696, %v697
      %v700 = vperm.slane %v643, 1
      %v701 = vadd.f32 %v698, %v700
      %v702 = vadd.f32 %v699, %v700
      %v703 = vpack.c.bf16 %v702, %v701
      %v704 = vld [vmem:[%s589] sm:$0xf]
      %v705 = vld [vmem:[%s589 + $0x4] sm:$0xf]
      %v706 = vld [vmem:[%s589 + $0x8] sm:$0xf]
      %v707 = vld [vmem:[%s589 + $0xc] sm:$0xf]
      %v708 = vld [vmem:[%s592] sm:$0x1]
      %v710 = vperm.slane %v708, 0
      %v716 = vunpack.c.l.b16 %v704
      %v717 = vunpack.c.l.b16 %v705
      %v718 = vunpack.c.l.b16 %v706
      %v719 = vunpack.c.l.b16 %v707
      %v720 = vpack.c.b16 %v717, %v716
      %v721 = vpack.c.b16 %v719, %v718
      %v725 = vsel %vm645, %v703, 0
      %727 = vmatpush.bf16.msra.mxu0 0
      %728 = vmatpush.bf16.msra.mxu0 0
      %729 = vmatpush.bf16.msra.mxu0 0
      %730 = vmatpush.bf16.msra.mxu0 0
      %731 = vmatpush.bf16.msra.mxu0 0
      %732 = vmatpush.bf16.msra.mxu0 0
      %733 = vmatpush.bf16.msra.mxu0 %v721
      %734 = vmatpush.bf16.msra.mxu0 %v720
      %735 = vmatmul.bf16.gmra.mxu0 %v725
      %v736 = vpop.f32.mrf.mxu0
      %v737 = vadd.f32 %v710, %v736
      %v738 = vpop.f32.mrf.mxu0
      %v739 = vadd.f32 %v710, %v738
      %740 = vdwg.mxu0
      %v741 = vmul.f32 %v737, %v635
      %v742 = vmul.f32 %v739, %v636
      %745 = vrot.lane.b32.xlu0 %v737, 124
      %v746 = vpop.permute.xlu0 %745
      %747 = vrot.lane.b32.xlu0 %v739, 124
      %v748 = vpop.permute.xlu0 %747
      %751 = vrot.lane.b32.xlu0 %v737, 28
      %v752 = vpop.permute.xlu0 %751
      %753 = vrot.lane.b32.xlu0 %v739, 28
      %v754 = vpop.permute.xlu0 %753
      %vm757 = vcmask 228352
      %v758 = vsel %vm757, %v746, %v752
      %v759 = vsel %vm757, %v748, %v754
      %v760 = vmul.f32 %v758, %v638
      %v761 = vmul.f32 %v759, %v639
      %v762 = vadd.f32 %v741, %v760
      %v763 = vadd.f32 %v742, %v761
      %764 = vrot.lane.b32.xlu0 %v737, 100
      %v765 = vpop.permute.xlu0 %764
      %766 = vrot.lane.b32.xlu0 %v739, 100
      %v767 = vpop.permute.xlu0 %766
      %770 = vrot.lane.b32.xlu0 %v737, 4
      %v771 = vpop.permute.xlu0 %770
      %772 = vrot.lane.b32.xlu0 %v739, 4
      %v773 = vpop.permute.xlu0 %772
      %vm776 = vcmask 31744
      %v777 = vsel %vm776, %v765, %v771
      %v778 = vsel %vm776, %v767, %v773
      %v779 = vmul.f32 %v777, %v641
      %v780 = vmul.f32 %v778, %v642
      %v781 = vadd.f32 %v762, %v779
      %v782 = vadd.f32 %v763, %v780
      %785 = vrot.lane.b32.xlu0 %v635, 32
      %v786 = vpop.permute.xlu0 %785
      %787 = vrot.lane.b32.xlu0 %v636, 32
      %v788 = vpop.permute.xlu0 %787
      %v791 = vmul.f32 %v737, %v786
      %v792 = vmul.f32 %v739, %v788
      %793 = vrot.lane.b32.xlu0 %v737, 92
      %v794 = vpop.permute.xlu0 %793
      %795 = vrot.lane.b32.xlu0 %v739, 92
      %v796 = vpop.permute.xlu0 %795
      %v799 = vsel %vm757, %v794, %v746
      %v800 = vsel %vm757, %v796, %v748
      %v801 = vmul.f32 %v799, %v638
      %v802 = vmul.f32 %v800, %v639
      %805 = vrot.lane.b32.xlu0 %v801, 32
      %v806 = vpop.permute.xlu0 %805
      %807 = vrot.lane.b32.xlu0 %v802, 32
      %v808 = vpop.permute.xlu0 %807
      %v811 = vadd.f32 %v791, %v806
      %v812 = vadd.f32 %v792, %v808
      %813 = vrot.lane.b32.xlu0 %v737, 68
      %v814 = vpop.permute.xlu0 %813
      %815 = vrot.lane.b32.xlu0 %v739, 68
      %v816 = vpop.permute.xlu0 %815
      %v819 = vsel %vm776, %v814, %v765
      %v820 = vsel %vm776, %v816, %v767
      %v821 = vmul.f32 %v819, %v641
      %v822 = vmul.f32 %v820, %v642
      %825 = vrot.lane.b32.xlu0 %v821, 32
      %v826 = vpop.permute.xlu0 %825
      %827 = vrot.lane.b32.xlu0 %v822, 32
      %v828 = vpop.permute.xlu0 %827
      %v831 = vadd.f32 %v811, %v826
      %v832 = vadd.f32 %v812, %v828
      %v833 = vpack.c.bf16 %v737, %v737
      %v834 = vpack.c.bf16 %v739, %v739
      %v835 = vpack.c.bf16 %v782, %v781
      %v836 = vpack.c.bf16 %v832, %v831
      %v838 = vperm.slane %v644, 0
      %841 = vrot.lane.b32.xlu0 %v836, 96
      %v842 = vpop.permute.xlu0 %841
      %vm843 = vcmask 64512
      %v845 = vsel %vm843, %v835, 0
      %v848 = vsel %vm843, %v842, 0
      %850 = vmatpush.bf16.xpose.msra.mxu0 0
      %851 = vmatpush.bf16.xpose.msra.mxu0 0
      %852 = vmatpush.bf16.xpose.msra.mxu0 0
      %853 = vmatpush.bf16.xpose.msra.mxu0 0
      %854 = vmatpush.bf16.xpose.msra.mxu0 0
      %855 = vmatpush.bf16.xpose.msra.mxu0 0
      %856 = vmatpush.bf16.xpose.msra.mxu0 0
      %857 = vmatpush.bf16.xpose.msra.mxu0 %v848
      %858 = vmatmul.bf16.gmra.mxu0 %v845
      %v859 = vpop.f32.mrf.mxu0
      %v860 = vadd.f32 %v838, %v859
      %v861 = vpop.f32.mrf.mxu0
      %v862 = vadd.f32 %v838, %v861
      %863 = vdwg.mxu0
      %vm864 = vcmask 130048
      %v865 = vsel %vm864, %v860, -inf
      %866 = vmax.xlane.f32.xlu0 %v865
      %v867 = vpop.xlane.xlu0 %866
      %v868 = vsel %vm864, %v862, -inf
      %869 = vmax.xlane.f32.xlu0 %v868
      %v870 = vpop.xlane.xlu0 %869
      %v871 = vsub.f32 %v860, %v867
      %v872 = vsub.f32 %v862, %v870
      %v873 = vmul.f32 %v871, 1.442695
      %v874 = vpow.pop %v873
      %v875 = vmul.f32 %v872, 1.442695
      %v876 = vpow.pop %v875
      %v877 = vsel %vm864, %v874, 0.0
      %878 = vadd.xlane.f32.xlu0 %v877
      %v879 = vpop.xlane.xlu0 %878
      %v880 = vsel %vm864, %v876, 0.0
      %881 = vadd.xlane.f32.xlu0 %v880
      %v882 = vpop.xlane.xlu0 %881
      %v883 = vrcp.pop %v879
      %v884 = vrcp.pop %v882
      %v885 = vmul.f32 %v874, %v883
      %v886 = vmul.f32 %v876, %v884
      %v887 = vpack.c.bf16 %v886, %v885
      %v890 = vunpack.c.l.b16 %v833
      %v891 = vunpack.c.l.b16 %v834
      %v892 = vpack.c.b16 %v891, %v890
      %893 = vrot.lane.b32.xlu0 %v892, 64
      %v894 = vpop.permute.xlu0 %893
      %v897 = vsel %vm864, %v887, 0
      %899 = vmatpush.bf16.msra.mxu0 0
      %900 = vmatpush.bf16.msra.mxu0 0
      %901 = vmatpush.bf16.msra.mxu0 0
      %902 = vmatpush.bf16.msra.mxu0 0
      %903 = vmatpush.bf16.msra.mxu0 0
      %904 = vmatpush.bf16.msra.mxu0 0
      %905 = vmatpush.bf16.msra.mxu0 0
      %906 = vmatpush.bf16.msra.mxu0 %v894
      %907 = vmatmul.bf16.gmra.mxu0 %v897
      %v908 = vpop.f32.mrf.mxu0
      %v909 = vadd.f32 0.0, %v908
      %v910 = vpop.f32.mrf.mxu0
      %v911 = vadd.f32 0.0, %v910
      %912 = vdwg.mxu0
      %913 = vst.msk [vmem:[#allocation2] sm:$0xff] %vm843, %v909
      %914 = vst.msk [vmem:[#allocation2 + $0x8] sm:$0xff] %vm843, %v911
      %916 = vrot.lane.b32.xlu0 %v835, 120
      %v917 = vpop.permute.xlu0 %916
      %918 = vrot.lane.b32.xlu0 %v836, 88
      %v919 = vpop.permute.xlu0 %918
      %v921 = vsel %vm843, %v917, 0
      %v924 = vsel %vm843, %v919, 0
      %926 = vmatpush.bf16.xpose.msra.mxu0 0
      %927 = vmatpush.bf16.xpose.msra.mxu0 0
      %928 = vmatpush.bf16.xpose.msra.mxu0 0
      %929 = vmatpush.bf16.xpose.msra.mxu0 0
      %930 = vmatpush.bf16.xpose.msra.mxu0 0
      %931 = vmatpush.bf16.xpose.msra.mxu0 0
      %932 = vmatpush.bf16.xpose.msra.mxu0 0
      %933 = vmatpush.bf16.xpose.msra.mxu0 %v924
      %934 = vmatmul.bf16.gmra.mxu0 %v921
      %v935 = vpop.f32.mrf.mxu0
      %v936 = vadd.f32 %v838, %v935
      %v937 = vpop.f32.mrf.mxu0
      %v938 = vadd.f32 %v838, %v937
      %939 = vdwg.mxu0
      %v940 = vsel %vm864, %v936, -inf
      %941 = vmax.xlane.f32.xlu0 %v940
      %v942 = vpop.xlane.xlu0 %941
      %v943 = vsel %vm864, %v938, -inf
      %944 = vmax.xlane.f32.xlu0 %v943
      %v945 = vpop.xlane.xlu0 %944
      %v946 = vsub.f32 %v936, %v942
      %v947 = vsub.f32 %v938, %v945
      %v948 = vmul.f32 %v946, 1.442695
      %v949 = vpow.pop %v948
      %v950 = vmul.f32 %v947, 1.442695
      %v951 = vpow.pop %v950
      %v952 = vsel %vm864, %v949, 0.0
      %953 = vadd.xlane.f32.xlu0 %v952
      %v954 = vpop.xlane.xlu0 %953
      %v955 = vsel %vm864, %v951, 0.0
      %956 = vadd.xlane.f32.xlu0 %v955
      %v957 = vpop.xlane.xlu0 %956
      %v958 = vrcp.pop %v954
      %v959 = vrcp.pop %v957
      %v960 = vmul.f32 %v949, %v958
      %v961 = vmul.f32 %v951, %v959
      %v962 = vpack.c.bf16 %v961, %v960
      %963 = vrot.lane.b32.xlu0 %v892, 56
      %v964 = vpop.permute.xlu0 %963
      %v967 = vsel %vm864, %v962, 0
      %969 = vmatpush.bf16.msra.mxu0 0
      %970 = vmatpush.bf16.msra.mxu0 0
      %971 = vmatpush.bf16.msra.mxu0 0
      %972 = vmatpush.bf16.msra.mxu0 0
      %973 = vmatpush.bf16.msra.mxu0 0
      %974 = vmatpush.bf16.msra.mxu0 0
      %975 = vmatpush.bf16.msra.mxu0 0
      %976 = vmatpush.bf16.msra.mxu0 %v964
      %977 = vmatmul.bf16.gmra.mxu0 %v967
      %v978 = vpop.f32.mrf.mxu0
      %v979 = vadd.f32 0.0, %v978
      %v980 = vpop.f32.mrf.mxu0
      %v981 = vadd.f32 0.0, %v980
      %982 = vdwg.mxu0
      %985 = vrot.lane.b32.xlu0 %v979, 8
      %v986 = vpop.permute.xlu0 %985
      %987 = vrot.lane.b32.xlu0 %v981, 8
      %v988 = vpop.permute.xlu0 %987
      %vm991 = vcmask 130112
      %992 = vst.msk [vmem:[#allocation2] sm:$0xff] %vm991, %v986
      %993 = vst.msk [vmem:[#allocation2 + $0x8] sm:$0xff] %vm991, %v988
      %994 = vrot.lane.b32.xlu0 %v835, 112
      %v995 = vpop.permute.xlu0 %994
      %996 = vrot.lane.b32.xlu0 %v836, 80
      %v997 = vpop.permute.xlu0 %996
      %v999 = vsel %vm843, %v995, 0
      %v1002 = vsel %vm843, %v997, 0
      %1004 = vmatpush.bf16.xpose.msra.mxu0 0
      %1005 = vmatpush.bf16.xpose.msra.mxu0 0
      %1006 = vmatpush.bf16.xpose.msra.mxu0 0
      %1007 = vmatpush.bf16.xpose.msra.mxu0 0
      %1008 = vmatpush.bf16.xpose.msra.mxu0 0
      %1009 = vmatpush.bf16.xpose.msra.mxu0 0
      %1010 = vmatpush.bf16.xpose.msra.mxu0 0
      %1011 = vmatpush.bf16.xpose.msra.mxu0 %v1002
      %1012 = vmatmul.bf16.gmra.mxu0 %v999
      %v1013 = vpop.f32.mrf.mxu0
      %v1014 = vadd.f32 %v838, %v1013
      %v1015 = vpop.f32.mrf.mxu0
      %v1016 = vadd.f32 %v838, %v1015
      %1017 = vdwg.mxu0
      %v1018 = vsel %vm864, %v1014, -inf
      %1019 = vmax.xlane.f32.xlu0 %v1018
      %v1020 = vpop.xlane.xlu0 %1019
      %v1021 = vsel %vm864, %v1016, -inf
      %1022 = vmax.xlane.f32.xlu0 %v1021
      %v1023 = vpop.xlane.xlu0 %1022
      %v1024 = vsub.f32 %v1014, %v1020
      %v1025 = vsub.f32 %v1016, %v1023
      %v1026 = vmul.f32 %v1024, 1.442695
      %v1027 = vpow.pop %v1026
      %v1028 = vmul.f32 %v1025, 1.442695
      %v1029 = vpow.pop %v1028
      %v1030 = vsel %vm864, %v1027, 0.0
      %1031 = vadd.xlane.f32.xlu0 %v1030
      %v1032 = vpop.xlane.xlu0 %1031
      %v1033 = vsel %vm864, %v1029, 0.0
      %1034 = vadd.xlane.f32.xlu0 %v1033
      %v1035 = vpop.xlane.xlu0 %1034
      %v1036 = vrcp.pop %v1032
      %v1037 = vrcp.pop %v1035
      %v1038 = vmul.f32 %v1027, %v1036
      %v1039 = vmul.f32 %v1029, %v1037
      %v1040 = vpack.c.bf16 %v1039, %v1038
      %1041 = vrot.lane.b32.xlu0 %v892, 48
      %v1042 = vpop.permute.xlu0 %1041
      %v1045 = vsel %vm864, %v1040, 0
      %1047 = vmatpush.bf16.msra.mxu0 0
      %1048 = vmatpush.bf16.msra.mxu0 0
      %1049 = vmatpush.bf16.msra.mxu0 0
      %1050 = vmatpush.bf16.msra.mxu0 0
      %1051 = vmatpush.bf16.msra.mxu0 0
      %1052 = vmatpush.bf16.msra.mxu0 0
      %1053 = vmatpush.bf16.msra.mxu0 0
      %1054 = vmatpush.bf16.msra.mxu0 %v1042
      %1055 = vmatmul.bf16.gmra.mxu0 %v1045
      %v1056 = vpop.f32.mrf.mxu0
      %v1057 = vadd.f32 0.0, %v1056
      %v1058 = vpop.f32.mrf.mxu0
      %v1059 = vadd.f32 0.0, %v1058
      %1060 = vdwg.mxu0
      %1063 = vrot.lane.b32.xlu0 %v1057, 16
      %v1064 = vpop.permute.xlu0 %1063
      %1065 = vrot.lane.b32.xlu0 %v1059, 16
      %v1066 = vpop.permute.xlu0 %1065
      %vm1069 = vcmask 195712
      %1070 = vst.msk [vmem:[#allocation2] sm:$0xff] %vm1069, %v1064
      %1071 = vst.msk [vmem:[#allocation2 + $0x8] sm:$0xff] %vm1069, %v1066
      %1072 = vrot.lane.b32.xlu0 %v835, 104
      %v1073 = vpop.permute.xlu0 %1072
      %1074 = vrot.lane.b32.xlu0 %v836, 72
      %v1075 = vpop.permute.xlu0 %1074
      %v1077 = vsel %vm843, %v1073, 0
      %v1080 = vsel %vm843, %v1075, 0
      %1082 = vmatpush.bf16.xpose.msra.mxu0 0
      %1083 = vmatpush.bf16.xpose.msra.mxu0 0
      %1084 = vmatpush.bf16.xpose.msra.mxu0 0
      %1085 = vmatpush.bf16.xpose.msra.mxu0 0
      %1086 = vmatpush.bf16.xpose.msra.mxu0 0
      %1087 = vmatpush.bf16.xpose.msra.mxu0 0
      %1088 = vmatpush.bf16.xpose.msra.mxu0 0
      %1089 = vmatpush.bf16.xpose.msra.mxu0 %v1080
      %1090 = vmatmul.bf16.gmra.mxu0 %v1077
      %v1091 = vpop.f32.mrf.mxu0
      %v1092 = vadd.f32 %v838, %v1091
      %v1093 = vpop.f32.mrf.mxu0
      %v1094 = vadd.f32 %v838, %v1093
      %1095 = vdwg.mxu0
      %v1096 = vsel %vm864, %v1092, -inf
      %1097 = vmax.xlane.f32.xlu0 %v1096
      %v1098 = vpop.xlane.xlu0 %1097
      %v1099 = vsel %vm864, %v1094, -inf
      %1100 = vmax.xlane.f32.xlu0 %v1099
      %v1101 = vpop.xlane.xlu0 %1100
      %v1102 = vsub.f32 %v1092, %v1098
      %v1103 = vsub.f32 %v1094, %v1101
      %v1104 = vmul.f32 %v1102, 1.442695
      %v1105 = vpow.pop %v1104
      %v1106 = vmul.f32 %v1103, 1.442695
      %v1107 = vpow.pop %v1106
      %v1108 = vsel %vm864, %v1105, 0.0
      %1109 = vadd.xlane.f32.xlu0 %v1108
      %v1110 = vpop.xlane.xlu0 %1109
      %v1111 = vsel %vm864, %v1107, 0.0
      %1112 = vadd.xlane.f32.xlu0 %v1111
      %v1113 = vpop.xlane.xlu0 %1112
      %v1114 = vrcp.pop %v1110
      %v1115 = vrcp.pop %v1113
      %v1116 = vmul.f32 %v1105, %v1114
      %v1117 = vmul.f32 %v1107, %v1115
      %v1118 = vpack.c.bf16 %v1117, %v1116
      %1119 = vrot.lane.b32.xlu0 %v892, 40
      %v1120 = vpop.permute.xlu0 %1119
      %v1123 = vsel %vm864, %v1118, 0
      %1125 = vmatpush.bf16.msra.mxu0 0
      %1126 = vmatpush.bf16.msra.mxu0 0
      %1127 = vmatpush.bf16.msra.mxu0 0
      %1128 = vmatpush.bf16.msra.mxu0 0
      %1129 = vmatpush.bf16.msra.mxu0 0
      %1130 = vmatpush.bf16.msra.mxu0 0
      %1131 = vmatpush.bf16.msra.mxu0 0
      %1132 = vmatpush.bf16.msra.mxu0 %v1120
      %1133 = vmatmul.bf16.gmra.mxu0 %v1123
      %v1134 = vpop.f32.mrf.mxu0
      %v1135 = vadd.f32 0.0, %v1134
      %v1136 = vpop.f32.mrf.mxu0
      %v1137 = vadd.f32 0.0, %v1136
      %1138 = vdwg.mxu0
      %1141 = vrot.lane.b32.xlu0 %v1135, 24
      %v1142 = vpop.permute.xlu0 %1141
      %1143 = vrot.lane.b32.xlu0 %v1137, 24
      %v1144 = vpop.permute.xlu0 %1143
      %vm1147 = vcmask 261312
      %1148 = vst.msk [vmem:[#allocation2] sm:$0xff] %vm1147, %v1142
      %1149 = vst.msk [vmem:[#allocation2 + $0x8] sm:$0xff] %vm1147, %v1144
      %v1150 = vld [vmem:[#allocation2] sm:$0xff]
      %v1151 = vld [vmem:[#allocation2 + $0x8] sm:$0xff]
      %v1152 = vpack.c.bf16 %v1151, %v1150
      %v1153 = vld [vmem:[%s597] sm:$0xf]
      %v1154 = vld [vmem:[%s597 + $0x4] sm:$0xf]
      %v1155 = vld [vmem:[%s597 + $0x8] sm:$0xf]
      %v1156 = vld [vmem:[%s597 + $0xc] sm:$0xf]
      %v1161 = vunpack.c.l.b16 %v1153
      %v1162 = vunpack.c.l.b16 %v1154
      %v1163 = vunpack.c.l.b16 %v1155
      %v1164 = vunpack.c.l.b16 %v1156
      %v1165 = vpack.c.b16 %v1162, %v1161
      %v1166 = vpack.c.b16 %v1164, %v1163
      %v1170 = vsel %vm645, %v1152, 0
      %1172 = vmatpush.bf16.msra.mxu0 0
      %1173 = vmatpush.bf16.msra.mxu0 0
      %1174 = vmatpush.bf16.msra.mxu0 0
      %1175 = vmatpush.bf16.msra.mxu0 0
      %1176 = vmatpush.bf16.msra.mxu0 0
      %1177 = vmatpush.bf16.msra.mxu0 0
      %1178 = vmatpush.bf16.msra.mxu0 %v1166
      %1179 = vmatpush.bf16.msra.mxu0 %v1165
      %1180 = vmatmul.bf16.gmra.mxu0 %v1170
      %v1181 = vpop.f32.mrf.mxu0
      %v1182 = vadd.f32 0.0, %v1181
      %v1183 = vpop.f32.mrf.mxu0
      %v1184 = vadd.f32 0.0, %v1183
      %1185 = vdwg.mxu0
      %v1186 = vadd.f32 %v633, %v1182
      %v1187 = vadd.f32 %v634, %v1184
      %v1188 = vld [vmem:[%s600] sm:$0x1]
      %v1190 = vperm.slane %v1188, 0
      %v1192 = vadd.f32 %v1186, %v1190
      %v1193 = vadd.f32 %v1187, %v1190
      %v1194 = vsel %vm645, %v1192, 0.0
      %1195 = vadd.xlane.f32.xlu0 %v1194
      %v1196 = vpop.xlane.xlu0 %1195
      %v1197 = vsel %vm645, %v1193, 0.0
      %1198 = vadd.xlane.f32.xlu0 %v1197
      %v1199 = vpop.xlane.xlu0 %1198
      %v1200 = vmul.f32 %v1196, %v658
      %v1201 = vmul.f32 %v1199, %v658
      %v1202 = vsub.f32 %v1192, %v1200
      %v1203 = vsub.f32 %v1193, %v1201
      %v1204 = vmul.f32 %v1202, %v1202
      %v1205 = vmul.f32 %v1203, %v1203
      %v1206 = vsel %vm645, %v1204, 0.0
      %1207 = vadd.xlane.f32.xlu0 %v1206
      %v1208 = vpop.xlane.xlu0 %1207
      %v1209 = vsel %vm645, %v1205, 0.0
      %1210 = vadd.xlane.f32.xlu0 %v1209
      %v1211 = vpop.xlane.xlu0 %1210
      %v1212 = vmul.f32 %v1208, %v658
      %v1213 = vmul.f32 %v1211, %v658
      %v1214 = vadd.f32 %v1212, 1e-05
      %v1215 = vadd.f32 %v1213, 1e-05
      %v1216 = vrsqrt.pop %v1214
      %v1217 = vmul.f32 %v1216, %v1214
      %v1218 = vmul.f32 %v1217, %v1216
      %v1219 = vmul.f32 0.5, %v1218
      %v1220 = vsub.f32 1.5, %v1219
      %v1221 = vmul.f32 %v1216, %v1220
      %vm1222 = vweird.f32 %v1214
      %vm1223 = vweird.f32 %v1216
      %vm1224 = vmor %vm1222, %vm1223
      %v1225 = vsel %vm1224, %v1216, %v1221
      %v1226 = vrsqrt.pop %v1215
      %v1227 = vmul.f32 %v1226, %v1215
      %v1228 = vmul.f32 %v1227, %v1226
      %v1229 = vmul.f32 0.5, %v1228
      %v1230 = vsub.f32 1.5, %v1229
      %v1231 = vmul.f32 %v1226, %v1230
      %vm1232 = vweird.f32 %v1215
      %vm1233 = vweird.f32 %v1226
      %vm1234 = vmor %vm1232, %vm1233
      %v1235 = vsel %vm1234, %v1226, %v1231
      %v1236 = vmul.f32 %v1202, %v1225
      %v1237 = vmul.f32 %v1203, %v1235
      %v1238 = vperm.slane %v643, 2
      %v1239 = vmul.f32 %v1236, %v1238
      %v1240 = vmul.f32 %v1237, %v1238
      %v1241 = vperm.slane %v643, 3
      %v1242 = vadd.f32 %v1239, %v1241
      %v1243 = vadd.f32 %v1240, %v1241
      %v1244 = vpack.c.bf16 %v1243, %v1242
      %v1245 = vld [vmem:[%s605] sm:$0xf]
      %v1246 = vld [vmem:[%s605 + $0x4] sm:$0xf]
      %v1247 = vld [vmem:[%s605 + $0x8] sm:$0xf]
      %v1248 = vld [vmem:[%s605 + $0xc] sm:$0xf]
      %v1249 = vld [vmem:[%s608] sm:$0x1]
      %v1251 = vperm.slane %v1249, 0
      %v1257 = vunpack.c.l.b16 %v1245
      %v1258 = vunpack.c.l.b16 %v1246
      %v1259 = vunpack.c.l.b16 %v1247
      %v1260 = vunpack.c.l.b16 %v1248
      %v1261 = vpack.c.b16 %v1258, %v1257
      %v1262 = vpack.c.b16 %v1260, %v1259
      %v1266 = vsel %vm645, %v1244, 0
      %1268 = vmatpush.bf16.msra.mxu0 0
      %1269 = vmatpush.bf16.msra.mxu0 0
      %1270 = vmatpush.bf16.msra.mxu0 0
      %1271 = vmatpush.bf16.msra.mxu0 0
      %1272 = vmatpush.bf16.msra.mxu0 0
      %1273 = vmatpush.bf16.msra.mxu0 0
      %1274 = vmatpush.bf16.msra.mxu0 %v1262
      %1275 = vmatpush.bf16.msra.mxu0 %v1261
      %1276 = vmatmul.bf16.gmra.mxu0 %v1266
      %v1277 = vpop.f32.mrf.mxu0
      %v1278 = vadd.f32 %v1251, %v1277
      %v1279 = vpop.f32.mrf.mxu0
      %v1280 = vadd.f32 %v1251, %v1279
      %1281 = vdwg.mxu0
      %v1282 = vmul.f32 %v1278, 0.5
      %v1283 = vmul.f32 %v1280, 0.5
      %v1284 = vrcp.pop 1.4142135
      %v1285 = vmul.f32 1.4142135, %v1284
      %v1286 = vsub.f32 1.0, %v1285
      %v1287 = vmul.f32 %v1284, %v1286
      %v1288 = vadd.f32 %v1284, %v1287
      %vm1289 = vweird.f32 %v1284
      %v1290 = vsel %vm1289, %v1284, %v1288
      %v1291 = vmul.f32 %v1278, %v1290
      %v1292 = vmul.f32 %v1280, %v1290
      %v1293 = vmul.f32 %v1291, %v1291
      %v1294 = vmin.f32 16.0, %v1293
      %v1295 = vmul.f32 %v1294, 2.1237322e-06
      %v1296 = vadd.f32 %v1295, 0.00028619796
      %v1297 = vmul.f32 %v1294, %v1296
      %v1298 = vadd.f32 %v1297, 0.0036580483
      %v1299 = vmul.f32 %v1294, %v1298
      %v1300 = vadd.f32 %v1299, 0.05243302
      %v1301 = vmul.f32 %v1294, %v1300
      %v1302 = vadd.f32 %v1301, 0.18741608
      %v1303 = vmul.f32 %v1294, %v1302
      %v1304 = vadd.f32 %v1303, 1.1283791
      %v1305 = vmul.f32 %v1291, %v1304
      %v1306 = vmul.f32 %v1294, 3.8918573e-05
      %v1307 = vadd.f32 %v1306, 0.001143296
      %v1308 = vmul.f32 %v1294, %v1307
      %v1309 = vadd.f32 %v1308, 0.014752088
      %v1310 = vmul.f32 %v1294, %v1309
      %v1311 = vadd.f32 %v1310, 0.112945676
      %v1312 = vmul.f32 %v1294, %v1311
      %v1313 = vadd.f32 %v1312, 0.4994258
      %v1314 = vmul.f32 %v1294, %v1313
      %v1315 = vadd.f32 %v1314, 1.0
      %v1316 = vrcp.pop %v1315
      %v1317 = vmul.f32 %v1315, %v1316
      %v1318 = vsub.f32 1.0, %v1317
      %v1319 = vmul.f32 %v1316, %v1318
      %v1320 = vadd.f32 %v1316, %v1319
      %vm1321 = vweird.f32 %v1315
      %vm1322 = vweird.f32 %v1316
      %vm1323 = vmor %vm1321, %vm1322
      %v1324 = vsel %vm1323, %v1316, %v1320
      %v1325 = vand.u32 2147483647, %v1315
      %vm1326 = vcmp.eq.f32.partialorder %v1325, 8.507059e+37
      %v1327 = vand.u32 %v1315, 2147483648
      %v1328 = vor.u32 1.1754944e-38, %v1327
      %v1329 = vsel %vm1326, %v1328, %v1324
      %v1330 = vmul.f32 %v1305, %v1329
      %v1331 = vmin.f32 %v1330, 1.0
      %v1332 = vmax.f32 %v1331, -1.0
      %v1333 = vmul.f32 %v1292, %v1292
      %v1334 = vmin.f32 16.0, %v1333
      %v1335 = vmul.f32 %v1334, 2.1237322e-06
      %v1336 = vadd.f32 %v1335, 0.00028619796
      %v1337 = vmul.f32 %v1334, %v1336
      %v1338 = vadd.f32 %v1337, 0.0036580483
      %v1339 = vmul.f32 %v1334, %v1338
      %v1340 = vadd.f32 %v1339, 0.05243302
      %v1341 = vmul.f32 %v1334, %v1340
      %v1342 = vadd.f32 %v1341, 0.18741608
      %v1343 = vmul.f32 %v1334, %v1342
      %v1344 = vadd.f32 %v1343, 1.1283791
      %v1345 = vmul.f32 %v1292, %v1344
      %v1346 = vmul.f32 %v1334, 3.8918573e-05
      %v1347 = vadd.f32 %v1346, 0.001143296
      %v1348 = vmul.f32 %v1334, %v1347
      %v1349 = vadd.f32 %v1348, 0.014752088
      %v1350 = vmul.f32 %v1334, %v1349
      %v1351 = vadd.f32 %v1350, 0.112945676
      %v1352 = vmul.f32 %v1334, %v1351
      %v1353 = vadd.f32 %v1352, 0.4994258
      %v1354 = vmul.f32 %v1334, %v1353
      %v1355 = vadd.f32 %v1354, 1.0
      %v1356 = vrcp.pop %v1355
      %v1357 = vmul.f32 %v1355, %v1356
      %v1358 = vsub.f32 1.0, %v1357
      %v1359 = vmul.f32 %v1356, %v1358
      %v1360 = vadd.f32 %v1356, %v1359
      %vm1361 = vweird.f32 %v1355
      %vm1362 = vweird.f32 %v1356
      %vm1363 = vmor %vm1361, %vm1362
      %v1364 = vsel %vm1363, %v1356, %v1360
      %v1365 = vand.u32 2147483647, %v1355
      %vm1366 = vcmp.eq.f32.partialorder %v1365, 8.507059e+37
      %v1367 = vand.u32 %v1355, 2147483648
      %v1368 = vor.u32 1.1754944e-38, %v1367
      %v1369 = vsel %vm1366, %v1368, %v1364
      %v1370 = vmul.f32 %v1345, %v1369
      %v1371 = vmin.f32 %v1370, 1.0
      %v1372 = vmax.f32 %v1371, -1.0
      %v1373 = vadd.f32 %v1332, 1.0
      %v1374 = vadd.f32 %v1372, 1.0
      %v1375 = vmul.f32 %v1282, %v1373
      %v1376 = vmul.f32 %v1283, %v1374
      %v1377 = vpack.c.bf16 %v1376, %v1375
      %v1378 = vld [vmem:[%s613] sm:$0xf]
      %v1379 = vld [vmem:[%s613 + $0x4] sm:$0xf]
      %v1380 = vld [vmem:[%s613 + $0x8] sm:$0xf]
      %v1381 = vld [vmem:[%s613 + $0xc] sm:$0xf]
      %v1382 = vld [vmem:[%s613 + $0x10] sm:$0xf]
      %v1383 = vld [vmem:[%s613 + $0x14] sm:$0xf]
      %v1384 = vld [vmem:[%s613 + $0x18] sm:$0xf]
      %v1385 = vld [vmem:[%s613 + $0x1c] sm:$0xf]
      %v1394 = vunpack.c.l.b16 %v1378
      %v1395 = vunpack.c.l.b16 %v1379
      %v1396 = vunpack.c.l.b16 %v1380
      %v1397 = vunpack.c.l.b16 %v1381
      %v1398 = vunpack.c.l.b16 %v1382
      %v1399 = vunpack.c.l.b16 %v1383
      %v1400 = vunpack.c.l.b16 %v1384
      %v1401 = vunpack.c.l.b16 %v1385
      %v1402 = vpack.c.b16 %v1395, %v1394
      %v1403 = vpack.c.b16 %v1397, %v1396
      %v1404 = vpack.c.b16 %v1399, %v1398
      %v1405 = vpack.c.b16 %v1401, %v1400
      %vm1410 = vcmask 523264
      %v1412 = vsel %vm1410, %v1377, 0
      %1414 = vmatpush.bf16.msra.mxu0 0
      %1415 = vmatpush.bf16.msra.mxu0 0
      %1416 = vmatpush.bf16.msra.mxu0 0
      %1417 = vmatpush.bf16.msra.mxu0 0
      %1418 = vmatpush.bf16.msra.mxu0 %v1405
      %1419 = vmatpush.bf16.msra.mxu0 %v1404
      %1420 = vmatpush.bf16.msra.mxu0 %v1403
      %1421 = vmatpush.bf16.msra.mxu0 %v1402
      %1422 = vmatmul.bf16.gmra.mxu0 %v1412
      %v1423 = vpop.f32.mrf.mxu0
      %v1424 = vadd.f32 0.0, %v1423
      %v1425 = vpop.f32.mrf.mxu0
      %v1426 = vadd.f32 0.0, %v1425
      %1427 = vdwg.mxu0
      %v1428 = vadd.f32 %v1192, %v1424
      %v1429 = vadd.f32 %v1193, %v1426
      %v1430 = vld [vmem:[%s616] sm:$0x1]
      %v1432 = vperm.slane %v1430, 0
      %v1434 = vadd.f32 %v1428, %v1432
      %v1435 = vadd.f32 %v1429, %v1432
      %p1436 = scmp.lt.s32.totalorder %s29, 1
      // Predicated region
      $region77: #{protein_1d_encoder_forward.1} parent=71 // pred_check
        %p1437 = pneg %p1436
      $region78: #{protein_1d_encoder_forward.1} parent=71 // pred_check_branch
        %1439 = sbr.rel (%p1437) target = $region80
      $region79: #{protein_1d_encoder_forward.1} parent=71 // pred_region
        %1440 = vst.msk [vmem:[%s621] sm:$0xff] %vm645, %v1434
        %1441 = vst.msk [vmem:[%s621 + $0x8] sm:$0xff] %vm645, %v1435
      $region80: #{protein_1d_encoder_forward.1} parent=71 // pred_fallthru
        _
      %p1442 = scmp.eq.s32.totalorder %s29, 1
      // Predicated region
      $region81: #{protein_1d_encoder_forward.1} parent=71 // pred_check
        %p1443 = pneg %p1442
      $region82: #{protein_1d_encoder_forward.1} parent=71 // pred_check_branch
        %1445 = sbr.rel (%p1443) target = $region84
      $region83: #{protein_1d_encoder_forward.1} parent=71 // pred_region
        %v1446 = vld [vmem:[%s12] sm:$0x1]
        %s1447 = scalar_lea.vmem %s12, 1
        %v1448 = vld [vmem:[%s1447] sm:$0x1]
        %v1449 = vsel %vm645, %v1434, 0.0
        %1450 = vadd.xlane.f32.xlu0 %v1449
        %v1451 = vpop.xlane.xlu0 %1450
        %v1452 = vsel %vm645, %v1435, 0.0
        %1453 = vadd.xlane.f32.xlu0 %v1452
        %v1454 = vpop.xlane.xlu0 %1453
        %v1455 = vmul.f32 %v1451, %v658
        %v1456 = vmul.f32 %v1454, %v658
        %v1457 = vsub.f32 %v1434, %v1455
        %v1458 = vsub.f32 %v1435, %v1456
        %v1459 = vmul.f32 %v1457, %v1457
        %v1460 = vmul.f32 %v1458, %v1458
        %v1461 = vsel %vm645, %v1459, 0.0
        %1462 = vadd.xlane.f32.xlu0 %v1461
        %v1463 = vpop.xlane.xlu0 %1462
        %v1464 = vsel %vm645, %v1460, 0.0
        %1465 = vadd.xlane.f32.xlu0 %v1464
        %v1466 = vpop.xlane.xlu0 %1465
        %v1467 = vmul.f32 %v1463, %v658
        %v1468 = vmul.f32 %v1466, %v658
        %v1469 = vadd.f32 %v1467, 1e-05
        %v1470 = vadd.f32 %v1468, 1e-05
        %v1471 = vrsqrt.pop %v1469
        %v1472 = vmul.f32 %v1471, %v1469
        %v1473 = vmul.f32 %v1472, %v1471
        %v1474 = vmul.f32 0.5, %v1473
        %v1475 = vsub.f32 1.5, %v1474
        %v1476 = vmul.f32 %v1471, %v1475
        %vm1477 = vweird.f32 %v1469
        %vm1478 = vweird.f32 %v1471
        %vm1479 = vmor %vm1477, %vm1478
        %v1480 = vsel %vm1479, %v1471, %v1476
        %v1481 = vrsqrt.pop %v1470
        %v1482 = vmul.f32 %v1481, %v1470
        %v1483 = vmul.f32 %v1482, %v1481
        %v1484 = vmul.f32 0.5, %v1483
        %v1485 = vsub.f32 1.5, %v1484
        %v1486 = vmul.f32 %v1481, %v1485
        %vm1487 = vweird.f32 %v1470
        %vm1488 = vweird.f32 %v1481
        %vm1489 = vmor %vm1487, %vm1488
        %v1490 = vsel %vm1489, %v1481, %v1486
        %v1491 = vmul.f32 %v1457, %v1480
        %v1492 = vmul.f32 %v1458, %v1490
        %v1494 = vperm.slane %v1446, 0
        %v1496 = vmul.f32 %v1491, %v1494
        %v1497 = vmul.f32 %v1492, %v1494
        %v1499 = vperm.slane %v1448, 0
        %v1501 = vadd.f32 %v1496, %v1499
        %v1502 = vadd.f32 %v1497, %v1499
        %1503 = vst.msk [vmem:[%s621] sm:$0xff] %vm645, %v1501
        %1504 = vst.msk [vmem:[%s621 + $0x8] sm:$0xff] %vm645, %v1502
      $region84: #{protein_1d_encoder_forward.1} parent=71 // pred_fallthru
        _
      %s1505 = smul.u32 2, %s28
      %p1506 = scmp.lt.s32.totalorder %s1505, 3
      %s1507 = scalar_select %p1506, %s1505, 3
      %s1508 = smul.addr %s1507, 8
      %s1509 = scalar_lea.vmem %s13, %s1508
      // Predicated region
      $region85: #{protein_1d_encoder_forward.1} parent=71 // pred_check
        %p1510 = pneg %p382
      $region86: #{protein_1d_encoder_forward.1} parent=71 // pred_check_branch
        %1512 = sbr.rel (%p1510) target = $region88
      $region87: #{protein_1d_encoder_forward.1} parent=71 // pred_region
        %s1513 = smul.u32 2, %s28
      $region88: #{protein_1d_encoder_forward.1} parent=71 // pred_fallthru
        _
    $region72: #{protein_1d_encoder_forward.1} parent=5 // pred_fallthru
      _
    %p1514 = scmp.le.s32.totalorder 2, %s19
    // Predicated region
    $region89: #{protein_1d_encoder_forward.1} parent=5 // pred_check
      %p1515 = pneg %p1514
    $region90: #{protein_1d_encoder_forward.1} parent=5 // pred_check_branch
      %1517 = sbr.rel (%p1515) target = $region92
    $region91: #{protein_1d_encoder_forward.1} parent=5 // pred_region
      %s1518 = ssub.s32 %s19, 2
      // Predicated region
      $region93: #{protein_1d_encoder_forward.1} parent=91 // pred_check
        %p1519 = pneg %p388
      $region94: #{protein_1d_encoder_forward.1} parent=91 // pred_check_branch
        %1521 = sbr.rel (%p1519) target = $region96
      $region95: #{protein_1d_encoder_forward.1} parent=91 // pred_region
        %s1522 = smul.u32 2, %s30
        %p1523 = scmp.lt.s32.totalorder %s1522, 3
        %s1524 = scalar_select %p1523, %s1522, 3
        %s1525 = smul.addr %s1524, 8
        %s1526 = scalar_lea.vmem %s13, %s1525
      $region96: #{protein_1d_encoder_forward.1} parent=91 // pred_fallthru
        _
    $region92: #{protein_1d_encoder_forward.1} parent=5 // pred_fallthru
      _
  $region6: #{protein_1d_encoder_forward.1} parent=0 // loop_footer
    %s23 = sadd.s32 1, %s19
  $region7: #{protein_1d_encoder_forward.1} parent=0 // loop_footer_branch
    %18 = sbr.rel target = $region3
  $region8: #{protein_1d_encoder_forward.1} parent=0 // loop_exit
    _

</llo_original>
